<compile_context>
chip_gen: v7x
topology: tpu7x:2x2x1
jax: 0.10.0
libtpu: 0.0.40
codegen_flags: <defaults>
</compile_context>

<pallas_src>
import math
from functools import partial

import jax
import jax.numpy as jnp
from jax.experimental import pallas as pl
from jax.experimental.pallas import tpu as pltpu

EMB_SIZE = 32
NUM_HEADS = 4
HEAD_DIM = EMB_SIZE // NUM_HEADS
MLP_HIDDEN = 4 * EMB_SIZE          # 128
LANES = 128
LN_EPS = 1e-5


# ---------------------------------------------------------------------------
# in-kernel helpers
# ---------------------------------------------------------------------------
def _mm(a, b):
    return jnp.dot(a, b, preferred_element_type=jnp.float32)


def _layer_norm(x, g, b):
    mu = jnp.mean(x, axis=-1, keepdims=True)
    var = jnp.mean(jnp.square(x - mu), axis=-1, keepdims=True)
    return (x - mu) * jax.lax.rsqrt(var + LN_EPS) * g + b


def _erf(x):
    # TODO(synk): lax.erf has no guaranteed Mosaic lowering; use the
    # Abramowitz-Stegun 7.1.26 rational approximation (|err| < 1.5e-7) so the
    # exact (erf-based) nn.GELU is reproduced to float32 accuracy.
    a1, a2, a3, a4, a5 = (0.254829592, -0.284496736, 1.421413741,
                          -1.453152027, 1.061405429)
    p = 0.3275911
    z = jnp.abs(x)
    t = 1.0 / (1.0 + p * z)
    poly = ((((a5 * t + a4) * t + a3) * t + a2) * t + a1) * t
    e = 1.0 - poly * jnp.exp(-z * z)
    return jnp.where(x >= 0, e, -e)


def _gelu(x):
    return 0.5 * x * (1.0 + _erf(x * (1.0 / math.sqrt(2.0))))


# ---------------------------------------------------------------------------
# Pallas kernel: one Block forward for a (Bblk, L, E) tile of activations.
#   w_ref: (224, 128)  packed weights (all lane-padded to 128 cols):
#       rows [  0: 32]  fused QKV weight   (E, 96) + zero pad  (Q cols scaled)
#       rows [ 32: 64]  out_proj weight    (E, E)  + zero pad
#       rows [ 64: 96]  c_fc weight        (E, 4E)              (exact 128)
#       rows [ 96:224]  c_proj weight      (4E, E) + zero pad
#   b_ref: (8, 128)    packed biases / LN affine params, one row each.
# ---------------------------------------------------------------------------
def block_kernel(x_ref, w_ref, b_ref, o_ref):
    Bblk, L, E = x_ref.shape
    BL = Bblk * L

    # ---- unpack slabs (sublane slices are 8-aligned; lane slices start at 0)
    ln1_g = b_ref[0:1, 0:E]
    ln1_b = b_ref[1:2, 0:E]
    ln2_g = b_ref[2:3, 0:E]
    ln2_b = b_ref[3:4, 0:E]
    qkv_b = b_ref[4:5, :]                       # (1, 128): [q*s | k | v | 0]
    op_b = b_ref[5:6, 0:E]
    fc_b = b_ref[6:7, :]                        # (1, 128)
    pj_b = b_ref[7:8, 0:E]

    w_qkv = w_ref[0:E, :]                       # (32, 128)
    w_op = w_ref[E:2 * E, :]                    # (32, 128), cols [0:E] live
    w_fc = w_ref[2 * E:3 * E, :]                # (32, 128)
    w_pj = w_ref[3 * E:3 * E + MLP_HIDDEN, :]   # (128, 128), cols [0:E] live

    # ---- ln_1 on the whole fused (B*L, E) row batch ----
    x = x_ref[...].reshape(BL, E)
    h = _layer_norm(x, ln1_g, ln1_b)

    # ---- fused QKV: (qw,kw,vw) composed with MHA in_proj, q-scale folded ----
    qkv = _mm(h, w_qkv) + qkv_b                 # (BL, 128)
    qkv3 = qkv.reshape(Bblk, L, LANES)

    # ---- per-head SDPA; out_proj contribution accumulated per head ----
    attn_acc = None
    for hd in range(NUM_HEADS):
        lo = hd * HEAD_DIM
        qh = qkv3[:, :, lo:lo + HEAD_DIM]                       # (B, L, D)
        kh = qkv3[:, :, E + lo:E + lo + HEAD_DIM]
        vh = qkv3[:, :, 2 * E + lo:2 * E + lo + HEAD_DIM]
        s = jnp.einsum("bqd,bkd->bqk", qh, kh,
                       preferred_element_type=jnp.float32)      # (B, L, L)
        s = s - jnp.max(s, axis=-1, keepdims=True)
        p = jnp.exp(s)
        p = p * pl.reciprocal(jnp.sum(p, axis=-1, keepdims=True), approx=True)
        oh = jnp.einsum("bqk,bkd->bqd", p, vh,
                        preferred_element_type=jnp.float32)     # (B, L, D)
        contrib = _mm(oh.reshape(BL, HEAD_DIM),
                      w_op[lo:lo + HEAD_DIM, :])                # (BL, 128)
        attn_acc = contrib if attn_acc is None else attn_acc + contrib

    # residual is taken from the ln_1 output (matches `x = ln_1(x); x = x + attn`)
    x1 = h + attn_acc[:, 0:E] + op_b

    # ---- ln_2 + GELU MLP (dropout = identity in eval mode) ----
    h2 = _layer_norm(x1, ln2_g, ln2_b)
    mid = _gelu(_mm(h2, w_fc) + fc_b)           # (BL, 4E)
    x2 = h2 + _mm(mid, w_pj)[:, 0:E] + pj_b

    o_ref[...] = x2.reshape(Bblk, L, E)


# ---------------------------------------------------------------------------
# host-side parameter init + folding/packing
# ---------------------------------------------------------------------------
def init_block_params(key):
    """Synthetic Block parameters; Linear weights stored (in, out)."""
    E, H = EMB_SIZE, MLP_HIDDEN
    keys = iter(jax.random.split(key, 16))

    def rnd(shape, scale=0.1):
        return (scale * jax.random.normal(next(keys), shape)).astype(jnp.float32)

    p = {}
    p["ln1_g"] = jnp.ones((E,), jnp.float32)
    p["ln1_b"] = jnp.zeros((E,), jnp.float32)
    p["qw_w"] = rnd((E, E)); p["qw_b"] = rnd((E,))
    p["kw_w"] = rnd((E, E)); p["kw_b"] = rnd((E,))
    p["vw_w"] = rnd((E, E)); p["vw_b"] = rnd((E,))
    p["ip_w"] = rnd((E, 3 * E)); p["ip_b"] = rnd((3 * E,))
    p["op_w"] = rnd((E, E)); p["op_b"] = rnd((E,))
    p["ln2_g"] = jnp.ones((E,), jnp.float32)
    p["ln2_b"] = jnp.zeros((E,), jnp.float32)
    p["fc_w"] = rnd((E, H)); p["fc_b"] = rnd((H,))
    p["pj_w"] = rnd((H, E)); p["pj_b"] = rnd((E,))
    return p


def pack_block_params(p):
    """Fold qkv pre-proj into in_proj (+ q scale) and pack into 2 slabs."""
    E = EMB_SIZE
    scale = 1.0 / math.sqrt(HEAD_DIM)
    hi = jax.lax.Precision.HIGHEST

    def fuse(w_pre, b_pre, col0):
        wi = p["ip_w"][:, col0:col0 + E]
        bi = p["ip_b"][col0:col0 + E]
        return (jnp.dot(w_pre, wi, precision=hi),
                jnp.dot(b_pre, wi, precision=hi) + bi)

    wq, bq = fuse(p["qw_w"], p["qw_b"], 0)
    wk, bk = fuse(p["kw_w"], p["kw_b"], E)
    wv, bv = fuse(p["vw_w"], p["vw_b"], 2 * E)
    wq, bq = wq * scale, bq * scale                      # fold softmax scale
    w_qkv = jnp.concatenate([wq, wk, wv], axis=1)        # (E, 96)
    b_qkv = jnp.concatenate([bq, bk, bv], axis=0)        # (96,)

    def pad_cols(w):
        return jnp.pad(w, ((0, 0), (0, LANES - w.shape[1])))

    def pad_row(v):
        return jnp.pad(v, (0, LANES - v.shape[0]))[None, :]

    w_slab = jnp.concatenate([
        pad_cols(w_qkv),        # rows   0: 32
        pad_cols(p["op_w"]),    # rows  32: 64
        p["fc_w"],              # rows  64: 96
        pad_cols(p["pj_w"]),    # rows  96:224
    ], axis=0).astype(jnp.float32)

    b_slab = jnp.concatenate([
        pad_row(p["ln1_g"]), pad_row(p["ln1_b"]),
        pad_row(p["ln2_g"]), pad_row(p["ln2_b"]),
        pad_row(b_qkv), pad_row(p["op_b"]),
        pad_row(p["fc_b"]), pad_row(p["pj_b"]),
    ], axis=0).astype(jnp.float32)
    return w_slab, b_slab


# ---------------------------------------------------------------------------
# wrapper
# ---------------------------------------------------------------------------
def _multi_tensorcore_chip():
    """True on chips with >1 TensorCore per device (v7x) -> use a batch grid."""
    try:
        kind = jax.devices()[0].device_kind.lower()
    except Exception:
        return False
    return ("v7" in kind) or ("tpu7" in kind)


@partial(jax.jit, static_argnames=("use_batch_grid",))
def block_forward(x, w_slab, b_slab, use_batch_grid=False):
    B, L, E = x.shape
    if use_batch_grid and B > 1:
        # One example per grid step, parallel axis -> both TCs busy on v7x.
        call = pl.pallas_call(
            block_kernel,
            out_shape=jax.ShapeDtypeStruct((B, L, E), jnp.float32),
            grid=(B,),
            in_specs=[
                pl.BlockSpec((1, L, E), lambda i: (i, 0, 0)),
                pl.BlockSpec(w_slab.shape, lambda i: (0, 0)),
                pl.BlockSpec(b_slab.shape, lambda i: (0, 0)),
            ],
            out_specs=pl.BlockSpec((1, L, E), lambda i: (i, 0, 0)),
            compiler_params=pltpu.CompilerParams(
                dimension_semantics=("parallel",)),
        )
    else:
        # Single-TC chips: grid-less, fully fused over the batch.
        vmem = pl.BlockSpec(memory_space=pltpu.MemorySpace.VMEM)
        call = pl.pallas_call(
            block_kernel,
            out_shape=jax.ShapeDtypeStruct((B, L, E), jnp.float32),
            in_specs=[vmem, vmem, vmem],
            out_specs=vmem,
        )
    return call(x, w_slab, b_slab)


# ---------------------------------------------------------------------------
# pure-JAX reference (unfused) for a numerical self-check
# ---------------------------------------------------------------------------
def block_forward_reference(x, p):
    E = EMB_SIZE
    scale = 1.0 / math.sqrt(HEAD_DIM)

    def ln(v, g, b):
        mu = jnp.mean(v, axis=-1, keepdims=True)
        var = jnp.mean(jnp.square(v - mu), axis=-1, keepdims=True)
        return (v - mu) / jnp.sqrt(var + LN_EPS) * g + b

    B, L, _ = x.shape
    h = ln(x, p["ln1_g"], p["ln1_b"])
    q = h @ p["qw_w"] + p["qw_b"]
    k = h @ p["kw_w"] + p["kw_b"]
    v = h @ p["vw_w"] + p["vw_b"]
    qp = q @ p["ip_w"][:, :E] + p["ip_b"][:E]
    kp = k @ p["ip_w"][:, E:2 * E] + p["ip_b"][E:2 * E]
    vp = v @ p["ip_w"][:, 2 * E:] + p["ip_b"][2 * E:]

    def split(t):  # (B, L, E) -> (B, H, L, D)
        return t.reshape(B, L, NUM_HEADS, HEAD_DIM).transpose(0, 2, 1, 3)

    s = jnp.einsum("bhqd,bhkd->bhqk", split(qp) * scale, split(kp))
    a = jax.nn.softmax(s, axis=-1)
    o = jnp.einsum("bhqk,bhkd->bhqd", a, split(vp))
    o = o.transpose(0, 2, 1, 3).reshape(B, L, E)
    x1 = h + (o @ p["op_w"] + p["op_b"])
    h2 = ln(x1, p["ln2_g"], p["ln2_b"])
    mid = jax.nn.gelu(h2 @ p["fc_w"] + p["fc_b"], approximate=False)
    return h2 + mid @ p["pj_w"] + p["pj_b"]


if __name__ == "__main__":
    key = jax.random.PRNGKey(0)
    xkey, pkey = jax.random.split(key)
    B, L, E = 2, 16, EMB_SIZE                    # B*L = 32 rows (sublane aligned)
    x = jax.random.normal(xkey, (B, L, E), dtype=jnp.float32)

    params = init_block_params(pkey)
    w_slab, b_slab = pack_block_params(params)

    out = block_forward(x, w_slab, b_slab,
                        use_batch_grid=_multi_tensorcore_chip())
    jax.block_until_ready(out)
    assert out.shape == (B, L, E) and out.dtype == jnp.float32

    ref = block_forward_reference(x, params)
    max_err = float(jnp.max(jnp.abs(out - ref)))
    assert max_err < 5e-2, f"kernel/reference mismatch: {max_err}"

    print("KERNEL_OK")
</pallas_src>

<mosaic_0001>
module attributes {stable_mosaic.version = 11 : i64} {
  func.func @block_kernel(%arg0: memref<2x16x32xf32, #tpu.memory_space<vmem>>, %arg1: memref<224x128xf32, #tpu.memory_space<vmem>>, %arg2: memref<8x128xf32, #tpu.memory_space<vmem>>, %arg3: memref<2x16x32xf32, #tpu.memory_space<vmem>>) attributes {dimension_semantics = [], scalar_prefetch = 0 : i64, scratch_operands = 0 : i64, tpu.core_type = #tpu.core_type<tc>} {
    %c0 = arith.constant 0 : index
    %c0_0 = arith.constant 0 : index
    %0 = vector.load %arg2[%c0, %c0_0] : memref<8x128xf32, #tpu.memory_space<vmem>>, vector<1x32xf32>
    %c1 = arith.constant 1 : index
    %c0_1 = arith.constant 0 : index
    %1 = vector.load %arg2[%c1, %c0_1] : memref<8x128xf32, #tpu.memory_space<vmem>>, vector<1x32xf32>
    %c2 = arith.constant 2 : index
    %c0_2 = arith.constant 0 : index
    %2 = vector.load %arg2[%c2, %c0_2] : memref<8x128xf32, #tpu.memory_space<vmem>>, vector<1x32xf32>
    %c3 = arith.constant 3 : index
    %c0_3 = arith.constant 0 : index
    %3 = vector.load %arg2[%c3, %c0_3] : memref<8x128xf32, #tpu.memory_space<vmem>>, vector<1x32xf32>
    %c4 = arith.constant 4 : index
    %c0_4 = arith.constant 0 : index
    %4 = vector.load %arg2[%c4, %c0_4] : memref<8x128xf32, #tpu.memory_space<vmem>>, vector<1x128xf32>
    %c5 = arith.constant 5 : index
    %c0_5 = arith.constant 0 : index
    %5 = vector.load %arg2[%c5, %c0_5] : memref<8x128xf32, #tpu.memory_space<vmem>>, vector<1x32xf32>
    %c6 = arith.constant 6 : index
    %c0_6 = arith.constant 0 : index
    %6 = vector.load %arg2[%c6, %c0_6] : memref<8x128xf32, #tpu.memory_space<vmem>>, vector<1x128xf32>
    %c7 = arith.constant 7 : index
    %c0_7 = arith.constant 0 : index
    %7 = vector.load %arg2[%c7, %c0_7] : memref<8x128xf32, #tpu.memory_space<vmem>>, vector<1x32xf32>
    %c0_8 = arith.constant 0 : index
    %c0_9 = arith.constant 0 : index
    %8 = vector.load %arg1[%c0_8, %c0_9] : memref<224x128xf32, #tpu.memory_space<vmem>>, vector<32x128xf32>
    %c32 = arith.constant 32 : index
    %c0_10 = arith.constant 0 : index
    %9 = vector.load %arg1[%c32, %c0_10] : memref<224x128xf32, #tpu.memory_space<vmem>>, vector<32x128xf32>
    %c64 = arith.constant 64 : index
    %c0_11 = arith.constant 0 : index
    %10 = vector.load %arg1[%c64, %c0_11] : memref<224x128xf32, #tpu.memory_space<vmem>>, vector<32x128xf32>
    %c96 = arith.constant 96 : index
    %c0_12 = arith.constant 0 : index
    %11 = vector.load %arg1[%c96, %c0_12] : memref<224x128xf32, #tpu.memory_space<vmem>>, vector<128x128xf32>
    %c0_13 = arith.constant 0 : index
    %c0_14 = arith.constant 0 : index
    %c0_15 = arith.constant 0 : index
    %12 = vector.load %arg0[%c0_13, %c0_14, %c0_15] : memref<2x16x32xf32, #tpu.memory_space<vmem>>, vector<2x16x32xf32>
    %13 = vector.shape_cast %12 : vector<2x16x32xf32> to vector<32x32xf32>
    %cst = arith.constant dense<0.000000e+00> : vector<32xf32>
    %14 = vector.multi_reduction <add>, %13, %cst [1] : vector<32x32xf32> to vector<32xf32>
    %15 = vector.shape_cast %14 : vector<32xf32> to vector<32x1xf32>
    %cst_16 = arith.constant 3.200000e+01 : f32
    %16 = vector.broadcast %cst_16 : f32 to vector<32x1xf32>
    %17 = arith.divf %15, %16 : vector<32x1xf32>
    %18 = vector.broadcast %17 : vector<32x1xf32> to vector<32x32xf32>
    %19 = arith.subf %13, %18 : vector<32x32xf32>
    %20 = arith.mulf %19, %19 : vector<32x32xf32>
    %cst_17 = arith.constant dense<0.000000e+00> : vector<32xf32>
    %21 = vector.multi_reduction <add>, %20, %cst_17 [1] : vector<32x32xf32> to vector<32xf32>
    %22 = vector.shape_cast %21 : vector<32xf32> to vector<32x1xf32>
    %cst_18 = arith.constant 3.200000e+01 : f32
    %23 = vector.broadcast %cst_18 : f32 to vector<32x1xf32>
    %24 = arith.divf %22, %23 : vector<32x1xf32>
    %25 = vector.broadcast %17 : vector<32x1xf32> to vector<32x32xf32>
    %26 = arith.subf %13, %25 : vector<32x32xf32>
    %cst_19 = arith.constant 9.99999974E-6 : f32
    %27 = vector.broadcast %cst_19 : f32 to vector<32x1xf32>
    %28 = arith.addf %24, %27 : vector<32x1xf32>
    %29 = math.rsqrt %28 : vector<32x1xf32>
    %30 = vector.broadcast %29 : vector<32x1xf32> to vector<32x32xf32>
    %31 = arith.mulf %26, %30 : vector<32x32xf32>
    %32 = vector.broadcast %0 : vector<1x32xf32> to vector<32x32xf32>
    %33 = arith.mulf %31, %32 : vector<32x32xf32>
    %34 = vector.broadcast %1 : vector<1x32xf32> to vector<32x32xf32>
    %35 = arith.addf %33, %34 : vector<32x32xf32>
    %cst_20 = arith.constant dense<0.000000e+00> : vector<32x128xf32>
    %36 = tpu.matmul %35, %8, %cst_20 {dimension_numbers = #tpu.dot_dimension_numbers<[1], [0], [0], [1], [0, 0, 1, 1], [], []>} : vector<32x32xf32>, vector<32x128xf32>, vector<32x128xf32> -> vector<32x128xf32>
    %37 = vector.broadcast %4 : vector<1x128xf32> to vector<32x128xf32>
    %38 = arith.addf %36, %37 : vector<32x128xf32>
    %39 = vector.shape_cast %38 : vector<32x128xf32> to vector<2x16x128xf32>
    %40 = vector.extract_strided_slice %39 {offsets = [0, 0, 0], sizes = [2, 16, 8], strides = [1, 1, 1]} : vector<2x16x128xf32> to vector<2x16x8xf32>
    %41 = vector.extract_strided_slice %39 {offsets = [0, 0, 32], sizes = [2, 16, 8], strides = [1, 1, 1]} : vector<2x16x128xf32> to vector<2x16x8xf32>
    %42 = vector.extract_strided_slice %39 {offsets = [0, 0, 64], sizes = [2, 16, 8], strides = [1, 1, 1]} : vector<2x16x128xf32> to vector<2x16x8xf32>
    "tpu.trace_start"() <{level = 10 : i32, message = "bqd,bkd->bqk"}> : () -> ()
    %cst_21 = arith.constant dense<0.000000e+00> : vector<2x16x16xf32>
    %43 = tpu.matmul %40, %41, %cst_21 {dimension_numbers = #tpu.dot_dimension_numbers<[2], [2], [1], [1], [0, 0, 0, 1, 1, 1], [0], [0]>} : vector<2x16x8xf32>, vector<2x16x8xf32>, vector<2x16x16xf32> -> vector<2x16x16xf32>
    "tpu.trace_stop"() : () -> ()
    %cst_22 = arith.constant dense<0xFF800000> : vector<2x16xf32>
    %44 = vector.multi_reduction <maximumf>, %43, %cst_22 [2] : vector<2x16x16xf32> to vector<2x16xf32>
    %45 = vector.shape_cast %44 : vector<2x16xf32> to vector<2x16x1xf32>
    %46 = vector.broadcast %45 : vector<2x16x1xf32> to vector<2x16x16xf32>
    %47 = arith.subf %43, %46 : vector<2x16x16xf32>
    %48 = math.exp %47 : vector<2x16x16xf32>
    %cst_23 = arith.constant dense<0.000000e+00> : vector<2x16xf32>
    %49 = vector.multi_reduction <add>, %48, %cst_23 [2] : vector<2x16x16xf32> to vector<2x16xf32>
    %50 = vector.shape_cast %49 : vector<2x16xf32> to vector<2x16x1xf32>
    %51 = tpu.reciprocal %50 {approx = true} : vector<2x16x1xf32> -> vector<2x16x1xf32>
    %52 = vector.broadcast %51 : vector<2x16x1xf32> to vector<2x16x16xf32>
    %53 = arith.mulf %48, %52 : vector<2x16x16xf32>
    "tpu.trace_start"() <{level = 10 : i32, message = "bqk,bkd->bqd"}> : () -> ()
    %cst_24 = arith.constant dense<0.000000e+00> : vector<2x16x8xf32>
    %54 = tpu.matmul %53, %42, %cst_24 {dimension_numbers = #tpu.dot_dimension_numbers<[2], [1], [1], [2], [0, 0, 0, 1, 1, 2], [0], [0]>} : vector<2x16x16xf32>, vector<2x16x8xf32>, vector<2x16x8xf32> -> vector<2x16x8xf32>
    "tpu.trace_stop"() : () -> ()
    %55 = vector.shape_cast %54 : vector<2x16x8xf32> to vector<32x8xf32>
    %56 = vector.extract_strided_slice %9 {offsets = [0, 0], sizes = [8, 128], strides = [1, 1]} : vector<32x128xf32> to vector<8x128xf32>
    %cst_25 = arith.constant dense<0.000000e+00> : vector<32x128xf32>
    %57 = tpu.matmul %55, %56, %cst_25 {dimension_numbers = #tpu.dot_dimension_numbers<[1], [0], [0], [1], [0, 0, 1, 1], [], []>} : vector<32x8xf32>, vector<8x128xf32>, vector<32x128xf32> -> vector<32x128xf32>
    %58 = vector.extract_strided_slice %39 {offsets = [0, 0, 8], sizes = [2, 16, 8], strides = [1, 1, 1]} : vector<2x16x128xf32> to vector<2x16x8xf32>
    %59 = vector.extract_strided_slice %39 {offsets = [0, 0, 40], sizes = [2, 16, 8], strides = [1, 1, 1]} : vector<2x16x128xf32> to vector<2x16x8xf32>
    %60 = vector.extract_strided_slice %39 {offsets = [0, 0, 72], sizes = [2, 16, 8], strides = [1, 1, 1]} : vector<2x16x128xf32> to vector<2x16x8xf32>
    "tpu.trace_start"() <{level = 10 : i32, message = "bqd,bkd->bqk"}> : () -> ()
    %cst_26 = arith.constant dense<0.000000e+00> : vector<2x16x16xf32>
    %61 = tpu.matmul %58, %59, %cst_26 {dimension_numbers = #tpu.dot_dimension_numbers<[2], [2], [1], [1], [0, 0, 0, 1, 1, 1], [0], [0]>} : vector<2x16x8xf32>, vector<2x16x8xf32>, vector<2x16x16xf32> -> vector<2x16x16xf32>
    "tpu.trace_stop"() : () -> ()
    %cst_27 = arith.constant dense<0xFF800000> : vector<2x16xf32>
    %62 = vector.multi_reduction <maximumf>, %61, %cst_27 [2] : vector<2x16x16xf32> to vector<2x16xf32>
    %63 = vector.shape_cast %62 : vector<2x16xf32> to vector<2x16x1xf32>
    %64 = vector.broadcast %63 : vector<2x16x1xf32> to vector<2x16x16xf32>
    %65 = arith.subf %61, %64 : vector<2x16x16xf32>
    %66 = math.exp %65 : vector<2x16x16xf32>
    %cst_28 = arith.constant dense<0.000000e+00> : vector<2x16xf32>
    %67 = vector.multi_reduction <add>, %66, %cst_28 [2] : vector<2x16x16xf32> to vector<2x16xf32>
    %68 = vector.shape_cast %67 : vector<2x16xf32> to vector<2x16x1xf32>
    %69 = tpu.reciprocal %68 {approx = true} : vector<2x16x1xf32> -> vector<2x16x1xf32>
    %70 = vector.broadcast %69 : vector<2x16x1xf32> to vector<2x16x16xf32>
    %71 = arith.mulf %66, %70 : vector<2x16x16xf32>
    "tpu.trace_start"() <{level = 10 : i32, message = "bqk,bkd->bqd"}> : () -> ()
    %cst_29 = arith.constant dense<0.000000e+00> : vector<2x16x8xf32>
    %72 = tpu.matmul %71, %60, %cst_29 {dimension_numbers = #tpu.dot_dimension_numbers<[2], [1], [1], [2], [0, 0, 0, 1, 1, 2], [0], [0]>} : vector<2x16x16xf32>, vector<2x16x8xf32>, vector<2x16x8xf32> -> vector<2x16x8xf32>
    "tpu.trace_stop"() : () -> ()
    %73 = vector.shape_cast %72 : vector<2x16x8xf32> to vector<32x8xf32>
    %74 = vector.extract_strided_slice %9 {offsets = [8, 0], sizes = [8, 128], strides = [1, 1]} : vector<32x128xf32> to vector<8x128xf32>
    %cst_30 = arith.constant dense<0.000000e+00> : vector<32x128xf32>
    %75 = tpu.matmul %73, %74, %cst_30 {dimension_numbers = #tpu.dot_dimension_numbers<[1], [0], [0], [1], [0, 0, 1, 1], [], []>} : vector<32x8xf32>, vector<8x128xf32>, vector<32x128xf32> -> vector<32x128xf32>
    %76 = arith.addf %57, %75 : vector<32x128xf32>
    %77 = vector.extract_strided_slice %39 {offsets = [0, 0, 16], sizes = [2, 16, 8], strides = [1, 1, 1]} : vector<2x16x128xf32> to vector<2x16x8xf32>
    %78 = vector.extract_strided_slice %39 {offsets = [0, 0, 48], sizes = [2, 16, 8], strides = [1, 1, 1]} : vector<2x16x128xf32> to vector<2x16x8xf32>
    %79 = vector.extract_strided_slice %39 {offsets = [0, 0, 80], sizes = [2, 16, 8], strides = [1, 1, 1]} : vector<2x16x128xf32> to vector<2x16x8xf32>
    "tpu.trace_start"() <{level = 10 : i32, message = "bqd,bkd->bqk"}> : () -> ()
    %cst_31 = arith.constant dense<0.000000e+00> : vector<2x16x16xf32>
    %80 = tpu.matmul %77, %78, %cst_31 {dimension_numbers = #tpu.dot_dimension_numbers<[2], [2], [1], [1], [0, 0, 0, 1, 1, 1], [0], [0]>} : vector<2x16x8xf32>, vector<2x16x8xf32>, vector<2x16x16xf32> -> vector<2x16x16xf32>
    "tpu.trace_stop"() : () -> ()
    %cst_32 = arith.constant dense<0xFF800000> : vector<2x16xf32>
    %81 = vector.multi_reduction <maximumf>, %80, %cst_32 [2] : vector<2x16x16xf32> to vector<2x16xf32>
    %82 = vector.shape_cast %81 : vector<2x16xf32> to vector<2x16x1xf32>
    %83 = vector.broadcast %82 : vector<2x16x1xf32> to vector<2x16x16xf32>
    %84 = arith.subf %80, %83 : vector<2x16x16xf32>
    %85 = math.exp %84 : vector<2x16x16xf32>
    %cst_33 = arith.constant dense<0.000000e+00> : vector<2x16xf32>
    %86 = vector.multi_reduction <add>, %85, %cst_33 [2] : vector<2x16x16xf32> to vector<2x16xf32>
    %87 = vector.shape_cast %86 : vector<2x16xf32> to vector<2x16x1xf32>
    %88 = tpu.reciprocal %87 {approx = true} : vector<2x16x1xf32> -> vector<2x16x1xf32>
    %89 = vector.broadcast %88 : vector<2x16x1xf32> to vector<2x16x16xf32>
    %90 = arith.mulf %85, %89 : vector<2x16x16xf32>
    "tpu.trace_start"() <{level = 10 : i32, message = "bqk,bkd->bqd"}> : () -> ()
    %cst_34 = arith.constant dense<0.000000e+00> : vector<2x16x8xf32>
    %91 = tpu.matmul %90, %79, %cst_34 {dimension_numbers = #tpu.dot_dimension_numbers<[2], [1], [1], [2], [0, 0, 0, 1, 1, 2], [0], [0]>} : vector<2x16x16xf32>, vector<2x16x8xf32>, vector<2x16x8xf32> -> vector<2x16x8xf32>
    "tpu.trace_stop"() : () -> ()
    %92 = vector.shape_cast %91 : vector<2x16x8xf32> to vector<32x8xf32>
    %93 = vector.extract_strided_slice %9 {offsets = [16, 0], sizes = [8, 128], strides = [1, 1]} : vector<32x128xf32> to vector<8x128xf32>
    %cst_35 = arith.constant dense<0.000000e+00> : vector<32x128xf32>
    %94 = tpu.matmul %92, %93, %cst_35 {dimension_numbers = #tpu.dot_dimension_numbers<[1], [0], [0], [1], [0, 0, 1, 1], [], []>} : vector<32x8xf32>, vector<8x128xf32>, vector<32x128xf32> -> vector<32x128xf32>
    %95 = arith.addf %76, %94 : vector<32x128xf32>
    %96 = vector.extract_strided_slice %39 {offsets = [0, 0, 24], sizes = [2, 16, 8], strides = [1, 1, 1]} : vector<2x16x128xf32> to vector<2x16x8xf32>
    %97 = vector.extract_strided_slice %39 {offsets = [0, 0, 56], sizes = [2, 16, 8], strides = [1, 1, 1]} : vector<2x16x128xf32> to vector<2x16x8xf32>
    %98 = vector.extract_strided_slice %39 {offsets = [0, 0, 88], sizes = [2, 16, 8], strides = [1, 1, 1]} : vector<2x16x128xf32> to vector<2x16x8xf32>
    "tpu.trace_start"() <{level = 10 : i32, message = "bqd,bkd->bqk"}> : () -> ()
    %cst_36 = arith.constant dense<0.000000e+00> : vector<2x16x16xf32>
    %99 = tpu.matmul %96, %97, %cst_36 {dimension_numbers = #tpu.dot_dimension_numbers<[2], [2], [1], [1], [0, 0, 0, 1, 1, 1], [0], [0]>} : vector<2x16x8xf32>, vector<2x16x8xf32>, vector<2x16x16xf32> -> vector<2x16x16xf32>
    "tpu.trace_stop"() : () -> ()
    %cst_37 = arith.constant dense<0xFF800000> : vector<2x16xf32>
    %100 = vector.multi_reduction <maximumf>, %99, %cst_37 [2] : vector<2x16x16xf32> to vector<2x16xf32>
    %101 = vector.shape_cast %100 : vector<2x16xf32> to vector<2x16x1xf32>
    %102 = vector.broadcast %101 : vector<2x16x1xf32> to vector<2x16x16xf32>
    %103 = arith.subf %99, %102 : vector<2x16x16xf32>
    %104 = math.exp %103 : vector<2x16x16xf32>
    %cst_38 = arith.constant dense<0.000000e+00> : vector<2x16xf32>
    %105 = vector.multi_reduction <add>, %104, %cst_38 [2] : vector<2x16x16xf32> to vector<2x16xf32>
    %106 = vector.shape_cast %105 : vector<2x16xf32> to vector<2x16x1xf32>
    %107 = tpu.reciprocal %106 {approx = true} : vector<2x16x1xf32> -> vector<2x16x1xf32>
    %108 = vector.broadcast %107 : vector<2x16x1xf32> to vector<2x16x16xf32>
    %109 = arith.mulf %104, %108 : vector<2x16x16xf32>
    "tpu.trace_start"() <{level = 10 : i32, message = "bqk,bkd->bqd"}> : () -> ()
    %cst_39 = arith.constant dense<0.000000e+00> : vector<2x16x8xf32>
    %110 = tpu.matmul %109, %98, %cst_39 {dimension_numbers = #tpu.dot_dimension_numbers<[2], [1], [1], [2], [0, 0, 0, 1, 1, 2], [0], [0]>} : vector<2x16x16xf32>, vector<2x16x8xf32>, vector<2x16x8xf32> -> vector<2x16x8xf32>
    "tpu.trace_stop"() : () -> ()
    %111 = vector.shape_cast %110 : vector<2x16x8xf32> to vector<32x8xf32>
    %112 = vector.extract_strided_slice %9 {offsets = [24, 0], sizes = [8, 128], strides = [1, 1]} : vector<32x128xf32> to vector<8x128xf32>
    %cst_40 = arith.constant dense<0.000000e+00> : vector<32x128xf32>
    %113 = tpu.matmul %111, %112, %cst_40 {dimension_numbers = #tpu.dot_dimension_numbers<[1], [0], [0], [1], [0, 0, 1, 1], [], []>} : vector<32x8xf32>, vector<8x128xf32>, vector<32x128xf32> -> vector<32x128xf32>
    %114 = arith.addf %95, %113 : vector<32x128xf32>
    %115 = vector.extract_strided_slice %114 {offsets = [0, 0], sizes = [32, 32], strides = [1, 1]} : vector<32x128xf32> to vector<32x32xf32>
    %116 = arith.addf %35, %115 : vector<32x32xf32>
    %117 = vector.broadcast %5 : vector<1x32xf32> to vector<32x32xf32>
    %118 = arith.addf %116, %117 : vector<32x32xf32>
    %cst_41 = arith.constant dense<0.000000e+00> : vector<32xf32>
    %119 = vector.multi_reduction <add>, %118, %cst_41 [1] : vector<32x32xf32> to vector<32xf32>
    %120 = vector.shape_cast %119 : vector<32xf32> to vector<32x1xf32>
    %cst_42 = arith.constant 3.200000e+01 : f32
    %121 = vector.broadcast %cst_42 : f32 to vector<32x1xf32>
    %122 = arith.divf %120, %121 : vector<32x1xf32>
    %123 = vector.broadcast %122 : vector<32x1xf32> to vector<32x32xf32>
    %124 = arith.subf %118, %123 : vector<32x32xf32>
    %125 = arith.mulf %124, %124 : vector<32x32xf32>
    %cst_43 = arith.constant dense<0.000000e+00> : vector<32xf32>
    %126 = vector.multi_reduction <add>, %125, %cst_43 [1] : vector<32x32xf32> to vector<32xf32>
    %127 = vector.shape_cast %126 : vector<32xf32> to vector<32x1xf32>
    %cst_44 = arith.constant 3.200000e+01 : f32
    %128 = vector.broadcast %cst_44 : f32 to vector<32x1xf32>
    %129 = arith.divf %127, %128 : vector<32x1xf32>
    %130 = vector.broadcast %122 : vector<32x1xf32> to vector<32x32xf32>
    %131 = arith.subf %118, %130 : vector<32x32xf32>
    %cst_45 = arith.constant 9.99999974E-6 : f32
    %132 = vector.broadcast %cst_45 : f32 to vector<32x1xf32>
    %133 = arith.addf %129, %132 : vector<32x1xf32>
    %134 = math.rsqrt %133 : vector<32x1xf32>
    %135 = vector.broadcast %134 : vector<32x1xf32> to vector<32x32xf32>
    %136 = arith.mulf %131, %135 : vector<32x32xf32>
    %137 = vector.broadcast %2 : vector<1x32xf32> to vector<32x32xf32>
    %138 = arith.mulf %136, %137 : vector<32x32xf32>
    %139 = vector.broadcast %3 : vector<1x32xf32> to vector<32x32xf32>
    %140 = arith.addf %138, %139 : vector<32x32xf32>
    %cst_46 = arith.constant dense<0.000000e+00> : vector<32x128xf32>
    %141 = tpu.matmul %140, %10, %cst_46 {dimension_numbers = #tpu.dot_dimension_numbers<[1], [0], [0], [1], [0, 0, 1, 1], [], []>} : vector<32x32xf32>, vector<32x128xf32>, vector<32x128xf32> -> vector<32x128xf32>
    %142 = vector.broadcast %6 : vector<1x128xf32> to vector<32x128xf32>
    %143 = arith.addf %141, %142 : vector<32x128xf32>
    %cst_47 = arith.constant 5.000000e-01 : f32
    %144 = vector.broadcast %cst_47 : f32 to vector<32x128xf32>
    %145 = arith.mulf %144, %143 : vector<32x128xf32>
    %cst_48 = arith.constant 0.707106769 : f32
    %146 = vector.broadcast %cst_48 : f32 to vector<32x128xf32>
    %147 = arith.mulf %143, %146 : vector<32x128xf32>
    %148 = math.absf %147 : vector<32x128xf32>
    %cst_49 = arith.constant 0.327591091 : f32
    %149 = vector.broadcast %cst_49 : f32 to vector<32x128xf32>
    %150 = arith.mulf %149, %148 : vector<32x128xf32>
    %cst_50 = arith.constant 1.000000e+00 : f32
    %151 = vector.broadcast %cst_50 : f32 to vector<32x128xf32>
    %152 = arith.addf %151, %150 : vector<32x128xf32>
    %cst_51 = arith.constant 1.000000e+00 : f32
    %153 = vector.broadcast %cst_51 : f32 to vector<32x128xf32>
    %154 = arith.divf %153, %152 : vector<32x128xf32>
    %cst_52 = arith.constant 1.06140542 : f32
    %155 = vector.broadcast %cst_52 : f32 to vector<32x128xf32>
    %156 = arith.mulf %155, %154 : vector<32x128xf32>
    %cst_53 = arith.constant -1.45315206 : f32
    %157 = vector.broadcast %cst_53 : f32 to vector<32x128xf32>
    %158 = arith.addf %156, %157 : vector<32x128xf32>
    %159 = arith.mulf %158, %154 : vector<32x128xf32>
    %cst_54 = arith.constant 1.42141378 : f32
    %160 = vector.broadcast %cst_54 : f32 to vector<32x128xf32>
    %161 = arith.addf %159, %160 : vector<32x128xf32>
    %162 = arith.mulf %161, %154 : vector<32x128xf32>
    %cst_55 = arith.constant -0.284496725 : f32
    %163 = vector.broadcast %cst_55 : f32 to vector<32x128xf32>
    %164 = arith.addf %162, %163 : vector<32x128xf32>
    %165 = arith.mulf %164, %154 : vector<32x128xf32>
    %cst_56 = arith.constant 0.254829586 : f32
    %166 = vector.broadcast %cst_56 : f32 to vector<32x128xf32>
    %167 = arith.addf %165, %166 : vector<32x128xf32>
    %168 = arith.mulf %167, %154 : vector<32x128xf32>
    %cst_57 = arith.constant 0.000000e+00 : f32
    %169 = vector.broadcast %cst_57 : f32 to vector<32x128xf32>
    %170 = arith.subf %169, %148 : vector<32x128xf32>
    %171 = arith.mulf %170, %148 : vector<32x128xf32>
    %172 = math.exp %171 : vector<32x128xf32>
    %173 = arith.mulf %168, %172 : vector<32x128xf32>
    %cst_58 = arith.constant 1.000000e+00 : f32
    %174 = vector.broadcast %cst_58 : f32 to vector<32x128xf32>
    %175 = arith.subf %174, %173 : vector<32x128xf32>
    %cst_59 = arith.constant 0.000000e+00 : f32
    %176 = vector.broadcast %cst_59 : f32 to vector<32x128xf32>
    %177 = arith.cmpf oge, %147, %176 : vector<32x128xf32>
    %cst_60 = arith.constant 0.000000e+00 : f32
    %178 = vector.broadcast %cst_60 : f32 to vector<32x128xf32>
    %179 = arith.subf %178, %175 : vector<32x128xf32>
    %180 = arith.select %177, %175, %179 : vector<32x128xi1>, vector<32x128xf32>
    %cst_61 = arith.constant 1.000000e+00 : f32
    %181 = vector.broadcast %cst_61 : f32 to vector<32x128xf32>
    %182 = arith.addf %181, %180 : vector<32x128xf32>
    %183 = arith.mulf %145, %182 : vector<32x128xf32>
    %cst_62 = arith.constant dense<0.000000e+00> : vector<32x128xf32>
    %184 = tpu.matmul %183, %11, %cst_62 {dimension_numbers = #tpu.dot_dimension_numbers<[1], [0], [0], [1], [0, 0, 1, 1], [], []>} : vector<32x128xf32>, vector<128x128xf32>, vector<32x128xf32> -> vector<32x128xf32>
    %185 = vector.extract_strided_slice %184 {offsets = [0, 0], sizes = [32, 32], strides = [1, 1]} : vector<32x128xf32> to vector<32x32xf32>
    %186 = arith.addf %140, %185 : vector<32x32xf32>
    %187 = vector.broadcast %7 : vector<1x32xf32> to vector<32x32xf32>
    %188 = arith.addf %186, %187 : vector<32x32xf32>
    %189 = vector.shape_cast %188 : vector<32x32xf32> to vector<2x16x32xf32>
    %c0_63 = arith.constant 0 : index
    %c0_64 = arith.constant 0 : index
    %c0_65 = arith.constant 0 : index
    %190 = vector.load %arg3[%c0_63, %c0_64, %c0_65] : memref<2x16x32xf32, #tpu.memory_space<vmem>>, vector<2x16x32xf32>
    tpu.vector_store %arg3[%c0_63, %c0_64, %c0_65], %189 {strides = array<i32>} : memref<2x16x32xf32, #tpu.memory_space<vmem>>, vector<2x16x32xf32>,
    return
  }
}

</mosaic_0001>

<llo_original>
// kernel: block_forward.1
$region0: #{block_forward.1}
  #allocation0 [shape = 'u32[]', space=smem, size = 0x4, offset = 0x4, fixed_abs, tag = 'smem constant byte address 0x4 - core index']
  #allocation1 [shape = 'u32[144,128]{1,0:T(1,128)}', space=vmem, size = 0x12000, scoped, tag = 'internal scratch']
  %s0 = inlined_call_operand.hbm [shape: f32[2,16,32], index: 0, kind: input, shape index: {}]
  %s1 = inlined_call_operand.hbm [shape: f32[224,128], index: 1, kind: input, shape index: {}]
  %s2 = inlined_call_operand.hbm [shape: f32[8,128], index: 2, kind: input, shape index: {}]
  %s3 = inlined_call_operand.hbm [shape: f32[2,16,32], index: 3, kind: output, shape index: {}]
  %s4 = sld [smem:[#allocation0]]
  $region34: #{block_forward.1} parent=0
    _
  %s6 = ssub.s32 1, %s4
  %s7 = scalar_select 0, %s6, %s4
  $region1: #{block_forward.1} parent=0
    #allocation2 [shape = 'u8[16384]{0}', space=vmem, size = 0x4000, scoped, tag = 'input window, operand 0, single buffered']
    #allocation3 [shape = 's32[1]{0}', space=sflag, size = 0x4, scoped, tag = 'scoped memory for block_forward.1']
    #allocation4 [shape = 's32[1]{0}', space=sflag, size = 0x4, scoped, tag = 'scoped memory for block_forward.1']
    #allocation5 [shape = 'u8[114688]{0}', space=vmem, size = 0x1c000, scoped, tag = 'input window, operand 1, single buffered']
    #allocation6 [shape = 's32[1]{0}', space=sflag, size = 0x4, scoped, tag = 'scoped memory for block_forward.1']
    #allocation7 [shape = 'u8[4096]{0}', space=vmem, size = 0x1000, scoped, tag = 'input window, operand 2, single buffered']
    #allocation8 [shape = 'u8[16384]{0}', space=vmem, size = 0x4000, scoped, tag = 'output window, operand 0, single buffered']
    %8 = vsyncpa [#allocation3], 0
    %9 = vsyncpa [#allocation6], 0
    %10 = vsyncpa [#allocation4], 0
    // Predicated region
    $region2: #{block_forward.1} parent=1 // pred_check
      _
    $region3: #{block_forward.1} parent=1 // pred_check_branch
      %12 = sbr.rel (0) target = $region5
    $region4: #{block_forward.1} parent=1 // pred_region
      %s14 = ssub.s32 512, 512
      %15 = vsyncadd [#allocation3], %s14
      %s16 = sshll.u32 [#allocation2], 4
      %s17 = int_to_ptr.vmem [resolvable:$true] %s16
      %22 = dma.hbm_to_vmem [thread:$0]  %s0, 512, %s17, [#allocation3], 128, 128, 8
    $region5: #{block_forward.1} parent=1 // pred_fallthru
      _
    // Predicated region
    $region6: #{block_forward.1} parent=1 // pred_check
      _
    $region7: #{block_forward.1} parent=1 // pred_check_branch
      %24 = sbr.rel (0) target = $region9
    $region8: #{block_forward.1} parent=1 // pred_region
      %s26 = ssub.s32 3584, 3584
      %27 = vsyncadd [#allocation6], %s26
      %s28 = sshll.u32 [#allocation5], 4
      %s29 = int_to_ptr.vmem [resolvable:$true] %s28
      %34 = dma.hbm_to_vmem [thread:$0]  %s1, 3584, %s29, [#allocation6], 128, 128, 8
    $region9: #{block_forward.1} parent=1 // pred_fallthru
      _
    // Predicated region
    $region10: #{block_forward.1} parent=1 // pred_check
      _
    $region11: #{block_forward.1} parent=1 // pred_check_branch
      %36 = sbr.rel (0) target = $region13
    $region12: #{block_forward.1} parent=1 // pred_region
      %s38 = ssub.s32 128, 128
      %39 = vsyncadd [#allocation6], %s38
      %s41 = sshll.u32 [#allocation7], 4
      %s42 = int_to_ptr.vmem [resolvable:$true] %s41
      %44 = dma.hbm_to_vmem [thread:$0]  %s2, 128, %s42, [#allocation6]
    $region13: #{block_forward.1} parent=1 // pred_fallthru
      _
    // Predicated region
    $region14: #{block_forward.1} parent=1 // pred_check
      _
    $region15: #{block_forward.1} parent=1 // pred_check_branch
      %46 = sbr.rel (0) target = $region17
    $region16: #{block_forward.1} parent=1 // pred_region
      %47 = dma.done [#allocation3], 512
    $region17: #{block_forward.1} parent=1 // pred_fallthru
      _
    // Predicated region
    $region18: #{block_forward.1} parent=1 // pred_check
      _
    $region19: #{block_forward.1} parent=1 // pred_check_branch
      %49 = sbr.rel (0) target = $region21
    $region20: #{block_forward.1} parent=1 // pred_region
      %50 = dma.done [#allocation6], 3584
    $region21: #{block_forward.1} parent=1 // pred_fallthru
      _
    // Predicated region
    $region22: #{block_forward.1} parent=1 // pred_check
      _
    $region23: #{block_forward.1} parent=1 // pred_check_branch
      %52 = sbr.rel (0) target = $region25
    $region24: #{block_forward.1} parent=1 // pred_region
      %53 = dma.done [#allocation6], 128
    $region25: #{block_forward.1} parent=1 // pred_fallthru
      _
    %v54 = vld [vmem:[#allocation7] sm:$0x1]
    %v55 = vld [vmem:[#allocation7 + $0x1] sm:$0x1]
    %v56 = vld [vmem:[#allocation7 + $0x2] sm:$0x1]
    %v57 = vld [vmem:[#allocation7 + $0x3] sm:$0x1]
    %v58 = vld [vmem:[#allocation7 + $0x4] sm:$0x1]
    %v59 = vld [vmem:[#allocation7 + $0x5] sm:$0x1]
    %v60 = vld [vmem:[#allocation7 + $0x6] sm:$0x1]
    %v61 = vld [vmem:[#allocation7 + $0x7] sm:$0x1]
    %v62 = vld [vmem:[#allocation5] sm:$0xff]
    %v63 = vld [vmem:[#allocation5 + $0x8] sm:$0xff]
    %v64 = vld [vmem:[#allocation5 + $0x10] sm:$0xff]
    %v65 = vld [vmem:[#allocation5 + $0x18] sm:$0xff]
    %v66 = vld [vmem:[#allocation5 + $0x20] sm:$0xff]
    %v67 = vld [vmem:[#allocation5 + $0x28] sm:$0xff]
    %v68 = vld [vmem:[#allocation5 + $0x30] sm:$0xff]
    %v69 = vld [vmem:[#allocation5 + $0x38] sm:$0xff]
    %v70 = vld [vmem:[#allocation5 + $0x40] sm:$0xff]
    %v71 = vld [vmem:[#allocation5 + $0x48] sm:$0xff]
    %v72 = vld [vmem:[#allocation5 + $0x50] sm:$0xff]
    %v73 = vld [vmem:[#allocation5 + $0x58] sm:$0xff]
    %v74 = vld [vmem:[#allocation5 + $0x60] sm:$0xff]
    %v75 = vld [vmem:[#allocation5 + $0x68] sm:$0xff]
    %v76 = vld [vmem:[#allocation5 + $0x70] sm:$0xff]
    %v77 = vld [vmem:[#allocation5 + $0x78] sm:$0xff]
    %v78 = vld [vmem:[#allocation5 + $0x80] sm:$0xff]
    %v79 = vld [vmem:[#allocation5 + $0x88] sm:$0xff]
    %v80 = vld [vmem:[#allocation5 + $0x90] sm:$0xff]
    %v81 = vld [vmem:[#allocation5 + $0x98] sm:$0xff]
    %v82 = vld [vmem:[#allocation5 + $0xa0] sm:$0xff]
    %v83 = vld [vmem:[#allocation5 + $0xa8] sm:$0xff]
    %v84 = vld [vmem:[#allocation5 + $0xb0] sm:$0xff]
    %v85 = vld [vmem:[#allocation5 + $0xb8] sm:$0xff]
    %v86 = vld [vmem:[#allocation5 + $0xc0] sm:$0xff]
    %v87 = vld [vmem:[#allocation5 + $0xc8] sm:$0xff]
    %v88 = vld [vmem:[#allocation5 + $0xd0] sm:$0xff]
    %v89 = vld [vmem:[#allocation5 + $0xd8] sm:$0xff]
    %v90 = vld [vmem:[#allocation2] sm:$0xff]
    %v91 = vld [vmem:[#allocation2 + $0x8] sm:$0xff]
    %v92 = vld [vmem:[#allocation2 + $0x10] sm:$0xff]
    %v93 = vld [vmem:[#allocation2 + $0x18] sm:$0xff]
    %vm94 = vcmask 261120
    %v95 = vsel %vm94, %v90, 0.0
    %96 = vadd.xlane.f32.xlu0 %v95
    %v97 = vpop.xlane.xlu0 %96
    %v98 = vsel %vm94, %v91, 0.0
    %99 = vadd.xlane.f32.xlu0 %v98
    %v100 = vpop.xlane.xlu0 %99
    %v101 = vsel %vm94, %v92, 0.0
    %102 = vadd.xlane.f32.xlu0 %v101
    %v103 = vpop.xlane.xlu0 %102
    %v104 = vsel %vm94, %v93, 0.0
    %105 = vadd.xlane.f32.xlu0 %v104
    %v106 = vpop.xlane.xlu0 %105
    %v107 = vrcp.pop 32.0
    %v108 = vmul.f32 %v97, %v107
    %v109 = vmul.f32 %v100, %v107
    %v110 = vmul.f32 %v103, %v107
    %v111 = vmul.f32 %v106, %v107
    %v112 = vsub.f32 %v90, %v108
    %v113 = vsub.f32 %v91, %v109
    %v114 = vsub.f32 %v92, %v110
    %v115 = vsub.f32 %v93, %v111
    %v116 = vmul.f32 %v112, %v112
    %v117 = vmul.f32 %v113, %v113
    %v118 = vmul.f32 %v114, %v114
    %v119 = vmul.f32 %v115, %v115
    %v120 = vsel %vm94, %v116, 0.0
    %121 = vadd.xlane.f32.xlu0 %v120
    %v122 = vpop.xlane.xlu0 %121
    %v123 = vsel %vm94, %v117, 0.0
    %124 = vadd.xlane.f32.xlu0 %v123
    %v125 = vpop.xlane.xlu0 %124
    %v126 = vsel %vm94, %v118, 0.0
    %127 = vadd.xlane.f32.xlu0 %v126
    %v128 = vpop.xlane.xlu0 %127
    %v129 = vsel %vm94, %v119, 0.0
    %130 = vadd.xlane.f32.xlu0 %v129
    %v131 = vpop.xlane.xlu0 %130
    %v132 = vmul.f32 %v122, %v107
    %v133 = vmul.f32 %v125, %v107
    %v134 = vmul.f32 %v128, %v107
    %v135 = vmul.f32 %v131, %v107
    %v136 = vadd.f32 %v132, 1e-05
    %v137 = vadd.f32 %v133, 1e-05
    %v138 = vadd.f32 %v134, 1e-05
    %v139 = vadd.f32 %v135, 1e-05
    %v140 = vrsqrt.pop %v136
    %v141 = vrsqrt.pop %v137
    %v142 = vrsqrt.pop %v138
    %v143 = vrsqrt.pop %v139
    %v144 = vmul.f32 %v112, %v140
    %v145 = vmul.f32 %v113, %v141
    %v146 = vmul.f32 %v114, %v142
    %v147 = vmul.f32 %v115, %v143
    %v148 = vlaneseq
    %v149 = vshrl.u32 %v148, 7
    %v150 = vsub.s32 0, %v149
    %v151 = vrot.slane %v54, %v150
    %v152 = vmul.f32 %v144, %v151
    %v153 = vmul.f32 %v145, %v151
    %v154 = vmul.f32 %v146, %v151
    %v155 = vmul.f32 %v147, %v151
    %v156 = vlaneseq
    %v157 = vshrl.u32 %v156, 7
    %v158 = vsub.s32 0, %v157
    %v159 = vrot.slane %v55, %v158
    %v160 = vadd.f32 %v152, %v159
    %v161 = vadd.f32 %v153, %v159
    %v162 = vadd.f32 %v154, %v159
    %v163 = vadd.f32 %v155, %v159
    %v164 = vlaneseq
    %v165 = vshrl.u32 %v164, 7
    %v166 = vsub.s32 0, %v165
    %v167 = vrot.slane %v58, %v166
    %v169 = vsel %vm94, %v160, 0
    %v172 = vsel %vm94, %v161, 0
    %v175 = vsel %vm94, %v162, 0
    %v178 = vsel %vm94, %v163, 0
    %180 = vmatprep.subr.mxu0 0.0
    %181 = vmatpush1.msra.mxu0 %v62
    %182 = vmatprep.subr.mxu0 0.0
    %183 = vmatpush1.msra.mxu0 %v63
    %184 = vmatprep.subr.mxu0 0.0
    %185 = vmatpush1.msra.mxu0 %v64
    %186 = vmatprep.subr.mxu0 0.0
    %187 = vmatpush1.msra.mxu0 %v65
    %188 = vmatprep.subr.mxu0 0.0
    %189 = vmatpush1.msra.mxu0 0.0
    %190 = vmatprep.subr.mxu0 0.0
    %191 = vmatpush1.msra.mxu0 0.0
    %192 = vmatprep.subr.mxu0 0.0
    %193 = vmatpush1.msra.mxu0 0.0
    %194 = vmatprep.subr.mxu0 0.0
    %195 = vmatpush1.msra.mxu0 0.0
    %196 = vmatprep.subr.mxu0 0.0
    %197 = vmatpush1.msra.mxu0 0.0
    %198 = vmatprep.subr.mxu0 0.0
    %199 = vmatpush1.msra.mxu0 0.0
    %200 = vmatprep.subr.mxu0 0.0
    %201 = vmatpush1.msra.mxu0 0.0
    %202 = vmatprep.subr.mxu0 0.0
    %203 = vmatpush1.msra.mxu0 0.0
    %204 = vmatprep.subr.mxu0 0.0
    %205 = vmatpush1.msra.mxu0 0.0
    %206 = vmatprep.subr.mxu0 0.0
    %207 = vmatpush1.msra.mxu0 0.0
    %208 = vmatprep.subr.mxu0 0.0
    %209 = vmatpush1.msra.mxu0 0.0
    %210 = vmatprep.subr.mxu0 0.0
    %211 = vmatpush1.msra.mxu0 0.0
    %212 = vmatprep.subr.mxu0 0.0
    %213 = vmatpush1.msra.mxu0 0.0
    %214 = vmatprep.subr.mxu0 0.0
    %215 = vmatpush1.msra.mxu0 0.0
    %216 = vmatprep.subr.mxu0 0.0
    %217 = vmatpush1.msra.mxu0 0.0
    %218 = vmatprep.subr.mxu0 0.0
    %219 = vmatpush1.msra.mxu0 0.0
    %220 = vmatprep.subr.mxu0 0.0
    %221 = vmatpush1.msra.mxu0 0.0
    %222 = vmatprep.subr.mxu0 0.0
    %223 = vmatpush1.msra.mxu0 0.0
    %224 = vmatprep.subr.mxu0 0.0
    %225 = vmatpush1.msra.mxu0 0.0
    %226 = vmatprep.subr.mxu0 0.0
    %227 = vmatpush1.msra.mxu0 0.0
    %228 = vmatprep.subr.mxu0 0.0
    %229 = vmatpush1.msra.mxu0 0.0
    %230 = vmatprep.subr.mxu0 0.0
    %231 = vmatpush1.msra.mxu0 0.0
    %232 = vmatprep.subr.mxu0 0.0
    %233 = vmatpush1.msra.mxu0 0.0
    %234 = vmatprep.subr.mxu0 0.0
    %235 = vmatpush1.msra.mxu0 0.0
    %236 = vmatprep.subr.mxu0 0.0
    %237 = vmatpush1.msra.mxu0 0.0
    %238 = vmatprep.subr.mxu0 0.0
    %239 = vmatpush1.msra.mxu0 0.0
    %240 = vmatprep.subr.mxu0 0.0
    %241 = vmatpush1.msra.mxu0 0.0
    %242 = vmatprep.subr.mxu0 0.0
    %243 = vmatpush1.msra.mxu0 0.0
    %244 = vmatprep.mubr.f32.mxu0 0.0
    %245 = vmatmul.mubr.f32.gmra.mrb[0].mxu0 %v169
    %v246 = vpop.f32.mrb[0].mxu0
    %v247 = vadd.f32 %v167, %v246
    %v248 = vpop.f32.mrb[0].mxu0
    %249 = vmatprep.mubr.f32.mxu0 0.0
    %250 = vmatmul.mubr.f32.gmra.mrb[0].mxu0 %v172
    %v251 = vpop.f32.mrb[0].mxu0
    %v252 = vadd.f32 %v167, %v251
    %v253 = vpop.f32.mrb[0].mxu0
    %254 = vmatprep.mubr.f32.mxu0 0.0
    %255 = vmatmul.mubr.f32.gmra.mrb[0].mxu0 %v175
    %v256 = vpop.f32.mrb[0].mxu0
    %v257 = vadd.f32 %v167, %v256
    %v258 = vpop.f32.mrb[0].mxu0
    %259 = vmatprep.mubr.f32.mxu0 0.0
    %260 = vmatmul.mubr.f32.gmra.mrb[0].mxu0 %v178
    %v261 = vpop.f32.mrb[0].mxu0
    %v262 = vadd.f32 %v167, %v261
    %v263 = vpop.f32.mrb[0].mxu0
    %264 = vdwg.mxu0
    %267 = vrot.lane.b32.xlu0 %v247, 96
    %v268 = vpop.permute.xlu0 %267
    %269 = vrot.lane.b32.xlu0 %v252, 96
    %v270 = vpop.permute.xlu0 %269
    %vm271 = vcmask 64512
    %v272 = vsel %vm271, %v247, 0
    %v274 = vsel %vm271, %v252, 0
    %v276 = vsel %vm271, %v268, 0
    %v278 = vsel %vm271, %v270, 0
    %280 = vmatprep.subr.mxu0 0.0
    %281 = vmatpush1.xpose.msra.mxu0 %v276
    %282 = vmatprep.subr.mxu0 0.0
    %283 = vmatpush1.xpose.msra.mxu0 %v278
    %284 = vmatprep.subr.mxu0 0.0
    %285 = vmatpush1.xpose.msra.mxu0 0.0
    %286 = vmatprep.subr.mxu0 0.0
    %287 = vmatpush1.xpose.msra.mxu0 0.0
    %288 = vmatprep.subr.mxu0 0.0
    %289 = vmatpush1.xpose.msra.mxu0 0.0
    %290 = vmatprep.subr.mxu0 0.0
    %291 = vmatpush1.xpose.msra.mxu0 0.0
    %292 = vmatprep.subr.mxu0 0.0
    %293 = vmatpush1.xpose.msra.mxu0 0.0
    %294 = vmatprep.subr.mxu0 0.0
    %295 = vmatpush1.xpose.msra.mxu0 0.0
    %296 = vmatprep.subr.mxu0 0.0
    %297 = vmatpush1.xpose.msra.mxu0 0.0
    %298 = vmatprep.subr.mxu0 0.0
    %299 = vmatpush1.xpose.msra.mxu0 0.0
    %300 = vmatprep.subr.mxu0 0.0
    %301 = vmatpush1.xpose.msra.mxu0 0.0
    %302 = vmatprep.subr.mxu0 0.0
    %303 = vmatpush1.xpose.msra.mxu0 0.0
    %304 = vmatprep.subr.mxu0 0.0
    %305 = vmatpush1.xpose.msra.mxu0 0.0
    %306 = vmatprep.subr.mxu0 0.0
    %307 = vmatpush1.xpose.msra.mxu0 0.0
    %308 = vmatprep.subr.mxu0 0.0
    %309 = vmatpush1.xpose.msra.mxu0 0.0
    %310 = vmatprep.subr.mxu0 0.0
    %311 = vmatpush1.xpose.msra.mxu0 0.0
    %312 = vmatprep.subr.mxu0 0.0
    %313 = vmatpush1.xpose.msra.mxu0 0.0
    %314 = vmatprep.subr.mxu0 0.0
    %315 = vmatpush1.xpose.msra.mxu0 0.0
    %316 = vmatprep.subr.mxu0 0.0
    %317 = vmatpush1.xpose.msra.mxu0 0.0
    %318 = vmatprep.subr.mxu0 0.0
    %319 = vmatpush1.xpose.msra.mxu0 0.0
    %320 = vmatprep.subr.mxu0 0.0
    %321 = vmatpush1.xpose.msra.mxu0 0.0
    %322 = vmatprep.subr.mxu0 0.0
    %323 = vmatpush1.xpose.msra.mxu0 0.0
    %324 = vmatprep.subr.mxu0 0.0
    %325 = vmatpush1.xpose.msra.mxu0 0.0
    %326 = vmatprep.subr.mxu0 0.0
    %327 = vmatpush1.xpose.msra.mxu0 0.0
    %328 = vmatprep.subr.mxu0 0.0
    %329 = vmatpush1.xpose.msra.mxu0 0.0
    %330 = vmatprep.subr.mxu0 0.0
    %331 = vmatpush1.xpose.msra.mxu0 0.0
    %332 = vmatprep.subr.mxu0 0.0
    %333 = vmatpush1.xpose.msra.mxu0 0.0
    %334 = vmatprep.subr.mxu0 0.0
    %335 = vmatpush1.xpose.msra.mxu0 0.0
    %336 = vmatprep.subr.mxu0 0.0
    %337 = vmatpush1.xpose.msra.mxu0 0.0
    %338 = vmatprep.subr.mxu0 0.0
    %339 = vmatpush1.xpose.msra.mxu0 0.0
    %340 = vmatprep.subr.mxu0 0.0
    %341 = vmatpush1.xpose.msra.mxu0 0.0
    %342 = vmatprep.subr.mxu0 0.0
    %343 = vmatpush1.xpose.msra.mxu0 0.0
    %344 = vmatprep.mubr.f32.mxu0 0.0
    %345 = vmatmul.mubr.f32.gmra.mrb[0].mxu0 %v272
    %v346 = vpop.f32.mrb[0].mxu0
    %v347 = vadd.f32 0.0, %v346
    %v348 = vpop.f32.mrb[0].mxu0
    %349 = vmatprep.mubr.f32.mxu0 0.0
    %350 = vmatmul.mubr.f32.gmra.mrb[0].mxu0 %v274
    %v351 = vpop.f32.mrb[0].mxu0
    %v352 = vadd.f32 0.0, %v351
    %v353 = vpop.f32.mrb[0].mxu0
    %354 = vdwg.mxu0
    %357 = vrot.lane.b32.xlu0 %v257, 96
    %v358 = vpop.permute.xlu0 %357
    %359 = vrot.lane.b32.xlu0 %v262, 96
    %v360 = vpop.permute.xlu0 %359
    %v361 = vsel %vm271, %v257, 0
    %v363 = vsel %vm271, %v262, 0
    %v365 = vsel %vm271, %v358, 0
    %v367 = vsel %vm271, %v360, 0
    %369 = vmatprep.subr.mxu0 0.0
    %370 = vmatpush1.xpose.msra.mxu0 %v365
    %371 = vmatprep.subr.mxu0 0.0
    %372 = vmatpush1.xpose.msra.mxu0 %v367
    %373 = vmatprep.subr.mxu0 0.0
    %374 = vmatpush1.xpose.msra.mxu0 0.0
    %375 = vmatprep.subr.mxu0 0.0
    %376 = vmatpush1.xpose.msra.mxu0 0.0
    %377 = vmatprep.subr.mxu0 0.0
    %378 = vmatpush1.xpose.msra.mxu0 0.0
    %379 = vmatprep.subr.mxu0 0.0
    %380 = vmatpush1.xpose.msra.mxu0 0.0
    %381 = vmatprep.subr.mxu0 0.0
    %382 = vmatpush1.xpose.msra.mxu0 0.0
    %383 = vmatprep.subr.mxu0 0.0
    %384 = vmatpush1.xpose.msra.mxu0 0.0
    %385 = vmatprep.subr.mxu0 0.0
    %386 = vmatpush1.xpose.msra.mxu0 0.0
    %387 = vmatprep.subr.mxu0 0.0
    %388 = vmatpush1.xpose.msra.mxu0 0.0
    %389 = vmatprep.subr.mxu0 0.0
    %390 = vmatpush1.xpose.msra.mxu0 0.0
    %391 = vmatprep.subr.mxu0 0.0
    %392 = vmatpush1.xpose.msra.mxu0 0.0
    %393 = vmatprep.subr.mxu0 0.0
    %394 = vmatpush1.xpose.msra.mxu0 0.0
    %395 = vmatprep.subr.mxu0 0.0
    %396 = vmatpush1.xpose.msra.mxu0 0.0
    %397 = vmatprep.subr.mxu0 0.0
    %398 = vmatpush1.xpose.msra.mxu0 0.0
    %399 = vmatprep.subr.mxu0 0.0
    %400 = vmatpush1.xpose.msra.mxu0 0.0
    %401 = vmatprep.subr.mxu0 0.0
    %402 = vmatpush1.xpose.msra.mxu0 0.0
    %403 = vmatprep.subr.mxu0 0.0
    %404 = vmatpush1.xpose.msra.mxu0 0.0
    %405 = vmatprep.subr.mxu0 0.0
    %406 = vmatpush1.xpose.msra.mxu0 0.0
    %407 = vmatprep.subr.mxu0 0.0
    %408 = vmatpush1.xpose.msra.mxu0 0.0
    %409 = vmatprep.subr.mxu0 0.0
    %410 = vmatpush1.xpose.msra.mxu0 0.0
    %411 = vmatprep.subr.mxu0 0.0
    %412 = vmatpush1.xpose.msra.mxu0 0.0
    %413 = vmatprep.subr.mxu0 0.0
    %414 = vmatpush1.xpose.msra.mxu0 0.0
    %415 = vmatprep.subr.mxu0 0.0
    %416 = vmatpush1.xpose.msra.mxu0 0.0
    %417 = vmatprep.subr.mxu0 0.0
    %418 = vmatpush1.xpose.msra.mxu0 0.0
    %419 = vmatprep.subr.mxu0 0.0
    %420 = vmatpush1.xpose.msra.mxu0 0.0
    %421 = vmatprep.subr.mxu0 0.0
    %422 = vmatpush1.xpose.msra.mxu0 0.0
    %423 = vmatprep.subr.mxu0 0.0
    %424 = vmatpush1.xpose.msra.mxu0 0.0
    %425 = vmatprep.subr.mxu0 0.0
    %426 = vmatpush1.xpose.msra.mxu0 0.0
    %427 = vmatprep.subr.mxu0 0.0
    %428 = vmatpush1.xpose.msra.mxu0 0.0
    %429 = vmatprep.subr.mxu0 0.0
    %430 = vmatpush1.xpose.msra.mxu0 0.0
    %431 = vmatprep.subr.mxu0 0.0
    %432 = vmatpush1.xpose.msra.mxu0 0.0
    %433 = vmatprep.mubr.f32.mxu0 0.0
    %434 = vmatmul.mubr.f32.gmra.mrb[0].mxu0 %v361
    %v435 = vpop.f32.mrb[0].mxu0
    %v436 = vadd.f32 0.0, %v435
    %v437 = vpop.f32.mrb[0].mxu0
    %438 = vmatprep.mubr.f32.mxu0 0.0
    %439 = vmatmul.mubr.f32.gmra.mrb[0].mxu0 %v363
    %v440 = vpop.f32.mrb[0].mxu0
    %v441 = vadd.f32 0.0, %v440
    %v442 = vpop.f32.mrb[0].mxu0
    %443 = vdwg.mxu0
    %vm444 = vcmask 130048
    %v445 = vsel %vm444, %v347, -inf
    %446 = vmax.xlane.f32.xlu0 %v445
    %v447 = vpop.xlane.xlu0 %446
    %v448 = vsel %vm444, %v352, -inf
    %449 = vmax.xlane.f32.xlu0 %v448
    %v450 = vpop.xlane.xlu0 %449
    %v451 = vsel %vm444, %v436, -inf
    %452 = vmax.xlane.f32.xlu0 %v451
    %v453 = vpop.xlane.xlu0 %452
    %v454 = vsel %vm444, %v441, -inf
    %455 = vmax.xlane.f32.xlu0 %v454
    %v456 = vpop.xlane.xlu0 %455
    %v457 = vsub.f32 %v347, %v447
    %v458 = vsub.f32 %v352, %v450
    %v459 = vsub.f32 %v436, %v453
    %v460 = vsub.f32 %v441, %v456
    %v461 = vmul.f32 %v457, 1.442695
    %v462 = vpow.pop %v461
    %v463 = vmul.f32 %v458, 1.442695
    %v464 = vpow.pop %v463
    %v465 = vmul.f32 %v459, 1.442695
    %v466 = vpow.pop %v465
    %v467 = vmul.f32 %v460, 1.442695
    %v468 = vpow.pop %v467
    %v469 = vsel %vm444, %v462, 0.0
    %470 = vadd.xlane.f32.xlu0 %v469
    %v471 = vpop.xlane.xlu0 %470
    %v472 = vsel %vm444, %v464, 0.0
    %473 = vadd.xlane.f32.xlu0 %v472
    %v474 = vpop.xlane.xlu0 %473
    %v475 = vsel %vm444, %v466, 0.0
    %476 = vadd.xlane.f32.xlu0 %v475
    %v477 = vpop.xlane.xlu0 %476
    %v478 = vsel %vm444, %v468, 0.0
    %479 = vadd.xlane.f32.xlu0 %v478
    %v480 = vpop.xlane.xlu0 %479
    %v481 = vrcp.pop %v471
    %v482 = vrcp.pop %v474
    %v483 = vrcp.pop %v477
    %v484 = vrcp.pop %v480
    %v485 = vmul.f32 %v462, %v481
    %v486 = vmul.f32 %v464, %v482
    %v487 = vmul.f32 %v466, %v483
    %v488 = vmul.f32 %v468, %v484
    %489 = vrot.lane.b32.xlu0 %v247, 64
    %v490 = vpop.permute.xlu0 %489
    %491 = vrot.lane.b32.xlu0 %v252, 64
    %v492 = vpop.permute.xlu0 %491
    %v496 = vsel %vm444, %v485, 0
    %v499 = vsel %vm444, %v486, 0
    %501 = vmatprep.subr.mxu0 0.0
    %502 = vmatpush1.msra.mxu0 %v490
    %503 = vmatprep.subr.mxu0 0.0
    %504 = vmatpush1.msra.mxu0 %v492
    %505 = vmatprep.subr.mxu0 0.0
    %506 = vmatpush1.msra.mxu0 0.0
    %507 = vmatprep.subr.mxu0 0.0
    %508 = vmatpush1.msra.mxu0 0.0
    %509 = vmatprep.subr.mxu0 0.0
    %510 = vmatpush1.msra.mxu0 0.0
    %511 = vmatprep.subr.mxu0 0.0
    %512 = vmatpush1.msra.mxu0 0.0
    %513 = vmatprep.subr.mxu0 0.0
    %514 = vmatpush1.msra.mxu0 0.0
    %515 = vmatprep.subr.mxu0 0.0
    %516 = vmatpush1.msra.mxu0 0.0
    %517 = vmatprep.subr.mxu0 0.0
    %518 = vmatpush1.msra.mxu0 0.0
    %519 = vmatprep.subr.mxu0 0.0
    %520 = vmatpush1.msra.mxu0 0.0
    %521 = vmatprep.subr.mxu0 0.0
    %522 = vmatpush1.msra.mxu0 0.0
    %523 = vmatprep.subr.mxu0 0.0
    %524 = vmatpush1.msra.mxu0 0.0
    %525 = vmatprep.subr.mxu0 0.0
    %526 = vmatpush1.msra.mxu0 0.0
    %527 = vmatprep.subr.mxu0 0.0
    %528 = vmatpush1.msra.mxu0 0.0
    %529 = vmatprep.subr.mxu0 0.0
    %530 = vmatpush1.msra.mxu0 0.0
    %531 = vmatprep.subr.mxu0 0.0
    %532 = vmatpush1.msra.mxu0 0.0
    %533 = vmatprep.subr.mxu0 0.0
    %534 = vmatpush1.msra.mxu0 0.0
    %535 = vmatprep.subr.mxu0 0.0
    %536 = vmatpush1.msra.mxu0 0.0
    %537 = vmatprep.subr.mxu0 0.0
    %538 = vmatpush1.msra.mxu0 0.0
    %539 = vmatprep.subr.mxu0 0.0
    %540 = vmatpush1.msra.mxu0 0.0
    %541 = vmatprep.subr.mxu0 0.0
    %542 = vmatpush1.msra.mxu0 0.0
    %543 = vmatprep.subr.mxu0 0.0
    %544 = vmatpush1.msra.mxu0 0.0
    %545 = vmatprep.subr.mxu0 0.0
    %546 = vmatpush1.msra.mxu0 0.0
    %547 = vmatprep.subr.mxu0 0.0
    %548 = vmatpush1.msra.mxu0 0.0
    %549 = vmatprep.subr.mxu0 0.0
    %550 = vmatpush1.msra.mxu0 0.0
    %551 = vmatprep.subr.mxu0 0.0
    %552 = vmatpush1.msra.mxu0 0.0
    %553 = vmatprep.subr.mxu0 0.0
    %554 = vmatpush1.msra.mxu0 0.0
    %555 = vmatprep.subr.mxu0 0.0
    %556 = vmatpush1.msra.mxu0 0.0
    %557 = vmatprep.subr.mxu0 0.0
    %558 = vmatpush1.msra.mxu0 0.0
    %559 = vmatprep.subr.mxu0 0.0
    %560 = vmatpush1.msra.mxu0 0.0
    %561 = vmatprep.subr.mxu0 0.0
    %562 = vmatpush1.msra.mxu0 0.0
    %563 = vmatprep.subr.mxu0 0.0
    %564 = vmatpush1.msra.mxu0 0.0
    %565 = vmatprep.mubr.f32.mxu0 0.0
    %566 = vmatmul.mubr.f32.gmra.mrb[0].mxu0 %v496
    %v567 = vpop.f32.mrb[0].mxu0
    %v568 = vadd.f32 0.0, %v567
    %v569 = vpop.f32.mrb[0].mxu0
    %570 = vmatprep.mubr.f32.mxu0 0.0
    %571 = vmatmul.mubr.f32.gmra.mrb[0].mxu0 %v499
    %v572 = vpop.f32.mrb[0].mxu0
    %v573 = vadd.f32 0.0, %v572
    %v574 = vpop.f32.mrb[0].mxu0
    %575 = vdwg.mxu0
    %576 = vrot.lane.b32.xlu0 %v257, 64
    %v577 = vpop.permute.xlu0 %576
    %578 = vrot.lane.b32.xlu0 %v262, 64
    %v579 = vpop.permute.xlu0 %578
    %v583 = vsel %vm444, %v487, 0
    %v586 = vsel %vm444, %v488, 0
    %588 = vmatprep.subr.mxu0 0.0
    %589 = vmatpush1.msra.mxu0 %v577
    %590 = vmatprep.subr.mxu0 0.0
    %591 = vmatpush1.msra.mxu0 %v579
    %592 = vmatprep.subr.mxu0 0.0
    %593 = vmatpush1.msra.mxu0 0.0
    %594 = vmatprep.subr.mxu0 0.0
    %595 = vmatpush1.msra.mxu0 0.0
    %596 = vmatprep.subr.mxu0 0.0
    %597 = vmatpush1.msra.mxu0 0.0
    %598 = vmatprep.subr.mxu0 0.0
    %599 = vmatpush1.msra.mxu0 0.0
    %600 = vmatprep.subr.mxu0 0.0
    %601 = vmatpush1.msra.mxu0 0.0
    %602 = vmatprep.subr.mxu0 0.0
    %603 = vmatpush1.msra.mxu0 0.0
    %604 = vmatprep.subr.mxu0 0.0
    %605 = vmatpush1.msra.mxu0 0.0
    %606 = vmatprep.subr.mxu0 0.0
    %607 = vmatpush1.msra.mxu0 0.0
    %608 = vmatprep.subr.mxu0 0.0
    %609 = vmatpush1.msra.mxu0 0.0
    %610 = vmatprep.subr.mxu0 0.0
    %611 = vmatpush1.msra.mxu0 0.0
    %612 = vmatprep.subr.mxu0 0.0
    %613 = vmatpush1.msra.mxu0 0.0
    %614 = vmatprep.subr.mxu0 0.0
    %615 = vmatpush1.msra.mxu0 0.0
    %616 = vmatprep.subr.mxu0 0.0
    %617 = vmatpush1.msra.mxu0 0.0
    %618 = vmatprep.subr.mxu0 0.0
    %619 = vmatpush1.msra.mxu0 0.0
    %620 = vmatprep.subr.mxu0 0.0
    %621 = vmatpush1.msra.mxu0 0.0
    %622 = vmatprep.subr.mxu0 0.0
    %623 = vmatpush1.msra.mxu0 0.0
    %624 = vmatprep.subr.mxu0 0.0
    %625 = vmatpush1.msra.mxu0 0.0
    %626 = vmatprep.subr.mxu0 0.0
    %627 = vmatpush1.msra.mxu0 0.0
    %628 = vmatprep.subr.mxu0 0.0
    %629 = vmatpush1.msra.mxu0 0.0
    %630 = vmatprep.subr.mxu0 0.0
    %631 = vmatpush1.msra.mxu0 0.0
    %632 = vmatprep.subr.mxu0 0.0
    %633 = vmatpush1.msra.mxu0 0.0
    %634 = vmatprep.subr.mxu0 0.0
    %635 = vmatpush1.msra.mxu0 0.0
    %636 = vmatprep.subr.mxu0 0.0
    %637 = vmatpush1.msra.mxu0 0.0
    %638 = vmatprep.subr.mxu0 0.0
    %639 = vmatpush1.msra.mxu0 0.0
    %640 = vmatprep.subr.mxu0 0.0
    %641 = vmatpush1.msra.mxu0 0.0
    %642 = vmatprep.subr.mxu0 0.0
    %643 = vmatpush1.msra.mxu0 0.0
    %644 = vmatprep.subr.mxu0 0.0
    %645 = vmatpush1.msra.mxu0 0.0
    %646 = vmatprep.subr.mxu0 0.0
    %647 = vmatpush1.msra.mxu0 0.0
    %648 = vmatprep.subr.mxu0 0.0
    %649 = vmatpush1.msra.mxu0 0.0
    %650 = vmatprep.subr.mxu0 0.0
    %651 = vmatpush1.msra.mxu0 0.0
    %652 = vmatprep.mubr.f32.mxu0 0.0
    %653 = vmatmul.mubr.f32.gmra.mrb[0].mxu0 %v583
    %v654 = vpop.f32.mrb[0].mxu0
    %v655 = vadd.f32 0.0, %v654
    %v656 = vpop.f32.mrb[0].mxu0
    %657 = vmatprep.mubr.f32.mxu0 0.0
    %658 = vmatmul.mubr.f32.gmra.mrb[0].mxu0 %v586
    %v659 = vpop.f32.mrb[0].mxu0
    %v660 = vadd.f32 0.0, %v659
    %v661 = vpop.f32.mrb[0].mxu0
    %662 = vdwg.mxu0
    %663 = vrot.lane.b32.xlu0 %v247, 120
    %v664 = vpop.permute.xlu0 %663
    %665 = vrot.lane.b32.xlu0 %v252, 120
    %v666 = vpop.permute.xlu0 %665
    %667 = vrot.lane.b32.xlu0 %v247, 88
    %v668 = vpop.permute.xlu0 %667
    %669 = vrot.lane.b32.xlu0 %v252, 88
    %v670 = vpop.permute.xlu0 %669
    %v671 = vsel %vm271, %v664, 0
    %v673 = vsel %vm271, %v666, 0
    %v675 = vsel %vm271, %v668, 0
    %v677 = vsel %vm271, %v670, 0
    %679 = vmatprep.subr.mxu0 0.0
    %680 = vmatpush1.xpose.msra.mxu0 %v675
    %681 = vmatprep.subr.mxu0 0.0
    %682 = vmatpush1.xpose.msra.mxu0 %v677
    %683 = vmatprep.subr.mxu0 0.0
    %684 = vmatpush1.xpose.msra.mxu0 0.0
    %685 = vmatprep.subr.mxu0 0.0
    %686 = vmatpush1.xpose.msra.mxu0 0.0
    %687 = vmatprep.subr.mxu0 0.0
    %688 = vmatpush1.xpose.msra.mxu0 0.0
    %689 = vmatprep.subr.mxu0 0.0
    %690 = vmatpush1.xpose.msra.mxu0 0.0
    %691 = vmatprep.subr.mxu0 0.0
    %692 = vmatpush1.xpose.msra.mxu0 0.0
    %693 = vmatprep.subr.mxu0 0.0
    %694 = vmatpush1.xpose.msra.mxu0 0.0
    %695 = vmatprep.subr.mxu0 0.0
    %696 = vmatpush1.xpose.msra.mxu0 0.0
    %697 = vmatprep.subr.mxu0 0.0
    %698 = vmatpush1.xpose.msra.mxu0 0.0
    %699 = vmatprep.subr.mxu0 0.0
    %700 = vmatpush1.xpose.msra.mxu0 0.0
    %701 = vmatprep.subr.mxu0 0.0
    %702 = vmatpush1.xpose.msra.mxu0 0.0
    %703 = vmatprep.subr.mxu0 0.0
    %704 = vmatpush1.xpose.msra.mxu0 0.0
    %705 = vmatprep.subr.mxu0 0.0
    %706 = vmatpush1.xpose.msra.mxu0 0.0
    %707 = vmatprep.subr.mxu0 0.0
    %708 = vmatpush1.xpose.msra.mxu0 0.0
    %709 = vmatprep.subr.mxu0 0.0
    %710 = vmatpush1.xpose.msra.mxu0 0.0
    %711 = vmatprep.subr.mxu0 0.0
    %712 = vmatpush1.xpose.msra.mxu0 0.0
    %713 = vmatprep.subr.mxu0 0.0
    %714 = vmatpush1.xpose.msra.mxu0 0.0
    %715 = vmatprep.subr.mxu0 0.0
    %716 = vmatpush1.xpose.msra.mxu0 0.0
    %717 = vmatprep.subr.mxu0 0.0
    %718 = vmatpush1.xpose.msra.mxu0 0.0
    %719 = vmatprep.subr.mxu0 0.0
    %720 = vmatpush1.xpose.msra.mxu0 0.0
    %721 = vmatprep.subr.mxu0 0.0
    %722 = vmatpush1.xpose.msra.mxu0 0.0
    %723 = vmatprep.subr.mxu0 0.0
    %724 = vmatpush1.xpose.msra.mxu0 0.0
    %725 = vmatprep.subr.mxu0 0.0
    %726 = vmatpush1.xpose.msra.mxu0 0.0
    %727 = vmatprep.subr.mxu0 0.0
    %728 = vmatpush1.xpose.msra.mxu0 0.0
    %729 = vmatprep.subr.mxu0 0.0
    %730 = vmatpush1.xpose.msra.mxu0 0.0
    %731 = vmatprep.subr.mxu0 0.0
    %732 = vmatpush1.xpose.msra.mxu0 0.0
    %733 = vmatprep.subr.mxu0 0.0
    %734 = vmatpush1.xpose.msra.mxu0 0.0
    %735 = vmatprep.subr.mxu0 0.0
    %736 = vmatpush1.xpose.msra.mxu0 0.0
    %737 = vmatprep.subr.mxu0 0.0
    %738 = vmatpush1.xpose.msra.mxu0 0.0
    %739 = vmatprep.subr.mxu0 0.0
    %740 = vmatpush1.xpose.msra.mxu0 0.0
    %741 = vmatprep.subr.mxu0 0.0
    %742 = vmatpush1.xpose.msra.mxu0 0.0
    %743 = vmatprep.mubr.f32.mxu0 0.0
    %744 = vmatmul.mubr.f32.gmra.mrb[0].mxu0 %v671
    %v745 = vpop.f32.mrb[0].mxu0
    %v746 = vadd.f32 0.0, %v745
    %v747 = vpop.f32.mrb[0].mxu0
    %748 = vmatprep.mubr.f32.mxu0 0.0
    %749 = vmatmul.mubr.f32.gmra.mrb[0].mxu0 %v673
    %v750 = vpop.f32.mrb[0].mxu0
    %v751 = vadd.f32 0.0, %v750
    %v752 = vpop.f32.mrb[0].mxu0
    %753 = vdwg.mxu0
    %754 = vrot.lane.b32.xlu0 %v257, 120
    %v755 = vpop.permute.xlu0 %754
    %756 = vrot.lane.b32.xlu0 %v262, 120
    %v757 = vpop.permute.xlu0 %756
    %758 = vrot.lane.b32.xlu0 %v257, 88
    %v759 = vpop.permute.xlu0 %758
    %760 = vrot.lane.b32.xlu0 %v262, 88
    %v761 = vpop.permute.xlu0 %760
    %v762 = vsel %vm271, %v755, 0
    %v764 = vsel %vm271, %v757, 0
    %v766 = vsel %vm271, %v759, 0
    %v768 = vsel %vm271, %v761, 0
    %770 = vmatprep.subr.mxu0 0.0
    %771 = vmatpush1.xpose.msra.mxu0 %v766
    %772 = vmatprep.subr.mxu0 0.0
    %773 = vmatpush1.xpose.msra.mxu0 %v768
    %774 = vmatprep.subr.mxu0 0.0
    %775 = vmatpush1.xpose.msra.mxu0 0.0
    %776 = vmatprep.subr.mxu0 0.0
    %777 = vmatpush1.xpose.msra.mxu0 0.0
    %778 = vmatprep.subr.mxu0 0.0
    %779 = vmatpush1.xpose.msra.mxu0 0.0
    %780 = vmatprep.subr.mxu0 0.0
    %781 = vmatpush1.xpose.msra.mxu0 0.0
    %782 = vmatprep.subr.mxu0 0.0
    %783 = vmatpush1.xpose.msra.mxu0 0.0
    %784 = vmatprep.subr.mxu0 0.0
    %785 = vmatpush1.xpose.msra.mxu0 0.0
    %786 = vmatprep.subr.mxu0 0.0
    %787 = vmatpush1.xpose.msra.mxu0 0.0
    %788 = vmatprep.subr.mxu0 0.0
    %789 = vmatpush1.xpose.msra.mxu0 0.0
    %790 = vmatprep.subr.mxu0 0.0
    %791 = vmatpush1.xpose.msra.mxu0 0.0
    %792 = vmatprep.subr.mxu0 0.0
    %793 = vmatpush1.xpose.msra.mxu0 0.0
    %794 = vmatprep.subr.mxu0 0.0
    %795 = vmatpush1.xpose.msra.mxu0 0.0
    %796 = vmatprep.subr.mxu0 0.0
    %797 = vmatpush1.xpose.msra.mxu0 0.0
    %798 = vmatprep.subr.mxu0 0.0
    %799 = vmatpush1.xpose.msra.mxu0 0.0
    %800 = vmatprep.subr.mxu0 0.0
    %801 = vmatpush1.xpose.msra.mxu0 0.0
    %802 = vmatprep.subr.mxu0 0.0
    %803 = vmatpush1.xpose.msra.mxu0 0.0
    %804 = vmatprep.subr.mxu0 0.0
    %805 = vmatpush1.xpose.msra.mxu0 0.0
    %806 = vmatprep.subr.mxu0 0.0
    %807 = vmatpush1.xpose.msra.mxu0 0.0
    %808 = vmatprep.subr.mxu0 0.0
    %809 = vmatpush1.xpose.msra.mxu0 0.0
    %810 = vmatprep.subr.mxu0 0.0
    %811 = vmatpush1.xpose.msra.mxu0 0.0
    %812 = vmatprep.subr.mxu0 0.0
    %813 = vmatpush1.xpose.msra.mxu0 0.0
    %814 = vmatprep.subr.mxu0 0.0
    %815 = vmatpush1.xpose.msra.mxu0 0.0
    %816 = vmatprep.subr.mxu0 0.0
    %817 = vmatpush1.xpose.msra.mxu0 0.0
    %818 = vmatprep.subr.mxu0 0.0
    %819 = vmatpush1.xpose.msra.mxu0 0.0
    %820 = vmatprep.subr.mxu0 0.0
    %821 = vmatpush1.xpose.msra.mxu0 0.0
    %822 = vmatprep.subr.mxu0 0.0
    %823 = vmatpush1.xpose.msra.mxu0 0.0
    %824 = vmatprep.subr.mxu0 0.0
    %825 = vmatpush1.xpose.msra.mxu0 0.0
    %826 = vmatprep.subr.mxu0 0.0
    %827 = vmatpush1.xpose.msra.mxu0 0.0
    %828 = vmatprep.subr.mxu0 0.0
    %829 = vmatpush1.xpose.msra.mxu0 0.0
    %830 = vmatprep.subr.mxu0 0.0
    %831 = vmatpush1.xpose.msra.mxu0 0.0
    %832 = vmatprep.subr.mxu0 0.0
    %833 = vmatpush1.xpose.msra.mxu0 0.0
    %834 = vmatprep.mubr.f32.mxu0 0.0
    %835 = vmatmul.mubr.f32.gmra.mrb[0].mxu0 %v762
    %v836 = vpop.f32.mrb[0].mxu0
    %v837 = vadd.f32 0.0, %v836
    %v838 = vpop.f32.mrb[0].mxu0
    %839 = vmatprep.mubr.f32.mxu0 0.0
    %840 = vmatmul.mubr.f32.gmra.mrb[0].mxu0 %v764
    %v841 = vpop.f32.mrb[0].mxu0
    %v842 = vadd.f32 0.0, %v841
    %v843 = vpop.f32.mrb[0].mxu0
    %844 = vdwg.mxu0
    %v845 = vsel %vm444, %v746, -inf
    %846 = vmax.xlane.f32.xlu0 %v845
    %v847 = vpop.xlane.xlu0 %846
    %v848 = vsel %vm444, %v751, -inf
    %849 = vmax.xlane.f32.xlu0 %v848
    %v850 = vpop.xlane.xlu0 %849
    %v851 = vsel %vm444, %v837, -inf
    %852 = vmax.xlane.f32.xlu0 %v851
    %v853 = vpop.xlane.xlu0 %852
    %v854 = vsel %vm444, %v842, -inf
    %855 = vmax.xlane.f32.xlu0 %v854
    %v856 = vpop.xlane.xlu0 %855
    %v857 = vsub.f32 %v746, %v847
    %v858 = vsub.f32 %v751, %v850
    %v859 = vsub.f32 %v837, %v853
    %v860 = vsub.f32 %v842, %v856
    %v861 = vmul.f32 %v857, 1.442695
    %v862 = vpow.pop %v861
    %v863 = vmul.f32 %v858, 1.442695
    %v864 = vpow.pop %v863
    %v865 = vmul.f32 %v859, 1.442695
    %v866 = vpow.pop %v865
    %v867 = vmul.f32 %v860, 1.442695
    %v868 = vpow.pop %v867
    %v869 = vsel %vm444, %v862, 0.0
    %870 = vadd.xlane.f32.xlu0 %v869
    %v871 = vpop.xlane.xlu0 %870
    %v872 = vsel %vm444, %v864, 0.0
    %873 = vadd.xlane.f32.xlu0 %v872
    %v874 = vpop.xlane.xlu0 %873
    %v875 = vsel %vm444, %v866, 0.0
    %876 = vadd.xlane.f32.xlu0 %v875
    %v877 = vpop.xlane.xlu0 %876
    %v878 = vsel %vm444, %v868, 0.0
    %879 = vadd.xlane.f32.xlu0 %v878
    %v880 = vpop.xlane.xlu0 %879
    %v881 = vrcp.pop %v871
    %v882 = vrcp.pop %v874
    %v883 = vrcp.pop %v877
    %v884 = vrcp.pop %v880
    %v885 = vmul.f32 %v862, %v881
    %v886 = vmul.f32 %v864, %v882
    %v887 = vmul.f32 %v866, %v883
    %v888 = vmul.f32 %v868, %v884
    %889 = vrot.lane.b32.xlu0 %v247, 56
    %v890 = vpop.permute.xlu0 %889
    %891 = vrot.lane.b32.xlu0 %v252, 56
    %v892 = vpop.permute.xlu0 %891
    %v896 = vsel %vm444, %v885, 0
    %v899 = vsel %vm444, %v886, 0
    %901 = vmatprep.subr.mxu0 0.0
    %902 = vmatpush1.msra.mxu0 %v890
    %903 = vmatprep.subr.mxu0 0.0
    %904 = vmatpush1.msra.mxu0 %v892
    %905 = vmatprep.subr.mxu0 0.0
    %906 = vmatpush1.msra.mxu0 0.0
    %907 = vmatprep.subr.mxu0 0.0
    %908 = vmatpush1.msra.mxu0 0.0
    %909 = vmatprep.subr.mxu0 0.0
    %910 = vmatpush1.msra.mxu0 0.0
    %911 = vmatprep.subr.mxu0 0.0
    %912 = vmatpush1.msra.mxu0 0.0
    %913 = vmatprep.subr.mxu0 0.0
    %914 = vmatpush1.msra.mxu0 0.0
    %915 = vmatprep.subr.mxu0 0.0
    %916 = vmatpush1.msra.mxu0 0.0
    %917 = vmatprep.subr.mxu0 0.0
    %918 = vmatpush1.msra.mxu0 0.0
    %919 = vmatprep.subr.mxu0 0.0
    %920 = vmatpush1.msra.mxu0 0.0
    %921 = vmatprep.subr.mxu0 0.0
    %922 = vmatpush1.msra.mxu0 0.0
    %923 = vmatprep.subr.mxu0 0.0
    %924 = vmatpush1.msra.mxu0 0.0
    %925 = vmatprep.subr.mxu0 0.0
    %926 = vmatpush1.msra.mxu0 0.0
    %927 = vmatprep.subr.mxu0 0.0
    %928 = vmatpush1.msra.mxu0 0.0
    %929 = vmatprep.subr.mxu0 0.0
    %930 = vmatpush1.msra.mxu0 0.0
    %931 = vmatprep.subr.mxu0 0.0
    %932 = vmatpush1.msra.mxu0 0.0
    %933 = vmatprep.subr.mxu0 0.0
    %934 = vmatpush1.msra.mxu0 0.0
    %935 = vmatprep.subr.mxu0 0.0
    %936 = vmatpush1.msra.mxu0 0.0
    %937 = vmatprep.subr.mxu0 0.0
    %938 = vmatpush1.msra.mxu0 0.0
    %939 = vmatprep.subr.mxu0 0.0
    %940 = vmatpush1.msra.mxu0 0.0
    %941 = vmatprep.subr.mxu0 0.0
    %942 = vmatpush1.msra.mxu0 0.0
    %943 = vmatprep.subr.mxu0 0.0
    %944 = vmatpush1.msra.mxu0 0.0
    %945 = vmatprep.subr.mxu0 0.0
    %946 = vmatpush1.msra.mxu0 0.0
    %947 = vmatprep.subr.mxu0 0.0
    %948 = vmatpush1.msra.mxu0 0.0
    %949 = vmatprep.subr.mxu0 0.0
    %950 = vmatpush1.msra.mxu0 0.0
    %951 = vmatprep.subr.mxu0 0.0
    %952 = vmatpush1.msra.mxu0 0.0
    %953 = vmatprep.subr.mxu0 0.0
    %954 = vmatpush1.msra.mxu0 0.0
    %955 = vmatprep.subr.mxu0 0.0
    %956 = vmatpush1.msra.mxu0 0.0
    %957 = vmatprep.subr.mxu0 0.0
    %958 = vmatpush1.msra.mxu0 0.0
    %959 = vmatprep.subr.mxu0 0.0
    %960 = vmatpush1.msra.mxu0 0.0
    %961 = vmatprep.subr.mxu0 0.0
    %962 = vmatpush1.msra.mxu0 0.0
    %963 = vmatprep.subr.mxu0 0.0
    %964 = vmatpush1.msra.mxu0 0.0
    %965 = vmatprep.mubr.f32.mxu0 0.0
    %966 = vmatmul.mubr.f32.gmra.mrb[0].mxu0 %v896
    %v967 = vpop.f32.mrb[0].mxu0
    %v968 = vadd.f32 0.0, %v967
    %v969 = vpop.f32.mrb[0].mxu0
    %970 = vmatprep.mubr.f32.mxu0 0.0
    %971 = vmatmul.mubr.f32.gmra.mrb[0].mxu0 %v899
    %v972 = vpop.f32.mrb[0].mxu0
    %v973 = vadd.f32 0.0, %v972
    %v974 = vpop.f32.mrb[0].mxu0
    %975 = vdwg.mxu0
    %976 = vrot.lane.b32.xlu0 %v257, 56
    %v977 = vpop.permute.xlu0 %976
    %978 = vrot.lane.b32.xlu0 %v262, 56
    %v979 = vpop.permute.xlu0 %978
    %v983 = vsel %vm444, %v887, 0
    %v986 = vsel %vm444, %v888, 0
    %988 = vmatprep.subr.mxu0 0.0
    %989 = vmatpush1.msra.mxu0 %v977
    %990 = vmatprep.subr.mxu0 0.0
    %991 = vmatpush1.msra.mxu0 %v979
    %992 = vmatprep.subr.mxu0 0.0
    %993 = vmatpush1.msra.mxu0 0.0
    %994 = vmatprep.subr.mxu0 0.0
    %995 = vmatpush1.msra.mxu0 0.0
    %996 = vmatprep.subr.mxu0 0.0
    %997 = vmatpush1.msra.mxu0 0.0
    %998 = vmatprep.subr.mxu0 0.0
    %999 = vmatpush1.msra.mxu0 0.0
    %1000 = vmatprep.subr.mxu0 0.0
    %1001 = vmatpush1.msra.mxu0 0.0
    %1002 = vmatprep.subr.mxu0 0.0
    %1003 = vmatpush1.msra.mxu0 0.0
    %1004 = vmatprep.subr.mxu0 0.0
    %1005 = vmatpush1.msra.mxu0 0.0
    %1006 = vmatprep.subr.mxu0 0.0
    %1007 = vmatpush1.msra.mxu0 0.0
    %1008 = vmatprep.subr.mxu0 0.0
    %1009 = vmatpush1.msra.mxu0 0.0
    %1010 = vmatprep.subr.mxu0 0.0
    %1011 = vmatpush1.msra.mxu0 0.0
    %1012 = vmatprep.subr.mxu0 0.0
    %1013 = vmatpush1.msra.mxu0 0.0
    %1014 = vmatprep.subr.mxu0 0.0
    %1015 = vmatpush1.msra.mxu0 0.0
    %1016 = vmatprep.subr.mxu0 0.0
    %1017 = vmatpush1.msra.mxu0 0.0
    %1018 = vmatprep.subr.mxu0 0.0
    %1019 = vmatpush1.msra.mxu0 0.0
    %1020 = vmatprep.subr.mxu0 0.0
    %1021 = vmatpush1.msra.mxu0 0.0
    %1022 = vmatprep.subr.mxu0 0.0
    %1023 = vmatpush1.msra.mxu0 0.0
    %1024 = vmatprep.subr.mxu0 0.0
    %1025 = vmatpush1.msra.mxu0 0.0
    %1026 = vmatprep.subr.mxu0 0.0
    %1027 = vmatpush1.msra.mxu0 0.0
    %1028 = vmatprep.subr.mxu0 0.0
    %1029 = vmatpush1.msra.mxu0 0.0
    %1030 = vmatprep.subr.mxu0 0.0
    %1031 = vmatpush1.msra.mxu0 0.0
    %1032 = vmatprep.subr.mxu0 0.0
    %1033 = vmatpush1.msra.mxu0 0.0
    %1034 = vmatprep.subr.mxu0 0.0
    %1035 = vmatpush1.msra.mxu0 0.0
    %1036 = vmatprep.subr.mxu0 0.0
    %1037 = vmatpush1.msra.mxu0 0.0
    %1038 = vmatprep.subr.mxu0 0.0
    %1039 = vmatpush1.msra.mxu0 0.0
    %1040 = vmatprep.subr.mxu0 0.0
    %1041 = vmatpush1.msra.mxu0 0.0
    %1042 = vmatprep.subr.mxu0 0.0
    %1043 = vmatpush1.msra.mxu0 0.0
    %1044 = vmatprep.subr.mxu0 0.0
    %1045 = vmatpush1.msra.mxu0 0.0
    %1046 = vmatprep.subr.mxu0 0.0
    %1047 = vmatpush1.msra.mxu0 0.0
    %1048 = vmatprep.subr.mxu0 0.0
    %1049 = vmatpush1.msra.mxu0 0.0
    %1050 = vmatprep.subr.mxu0 0.0
    %1051 = vmatpush1.msra.mxu0 0.0
    %1052 = vmatprep.mubr.f32.mxu0 0.0
    %1053 = vmatmul.mubr.f32.gmra.mrb[0].mxu0 %v983
    %v1054 = vpop.f32.mrb[0].mxu0
    %v1055 = vadd.f32 0.0, %v1054
    %v1056 = vpop.f32.mrb[0].mxu0
    %1057 = vmatprep.mubr.f32.mxu0 0.0
    %1058 = vmatmul.mubr.f32.gmra.mrb[0].mxu0 %v986
    %v1059 = vpop.f32.mrb[0].mxu0
    %v1060 = vadd.f32 0.0, %v1059
    %v1061 = vpop.f32.mrb[0].mxu0
    %1062 = vdwg.mxu0
    %v1064 = vsel %vm271, %v968, 0
    %v1067 = vsel %vm271, %v973, 0
    %v1070 = vsel %vm271, %v1055, 0
    %v1073 = vsel %vm271, %v1060, 0
    %1075 = vmatprep.subr.mxu0 0.0
    %1076 = vmatpush1.msra.mxu0 %v67
    %1077 = vmatprep.subr.mxu0 0.0
    %1078 = vmatpush1.msra.mxu0 0.0
    %1079 = vmatprep.subr.mxu0 0.0
    %1080 = vmatpush1.msra.mxu0 0.0
    %1081 = vmatprep.subr.mxu0 0.0
    %1082 = vmatpush1.msra.mxu0 0.0
    %1083 = vmatprep.subr.mxu0 0.0
    %1084 = vmatpush1.msra.mxu0 0.0
    %1085 = vmatprep.subr.mxu0 0.0
    %1086 = vmatpush1.msra.mxu0 0.0
    %1087 = vmatprep.subr.mxu0 0.0
    %1088 = vmatpush1.msra.mxu0 0.0
    %1089 = vmatprep.subr.mxu0 0.0
    %1090 = vmatpush1.msra.mxu0 0.0
    %1091 = vmatprep.subr.mxu0 0.0
    %1092 = vmatpush1.msra.mxu0 0.0
    %1093 = vmatprep.subr.mxu0 0.0
    %1094 = vmatpush1.msra.mxu0 0.0
    %1095 = vmatprep.subr.mxu0 0.0
    %1096 = vmatpush1.msra.mxu0 0.0
    %1097 = vmatprep.subr.mxu0 0.0
    %1098 = vmatpush1.msra.mxu0 0.0
    %1099 = vmatprep.subr.mxu0 0.0
    %1100 = vmatpush1.msra.mxu0 0.0
    %1101 = vmatprep.subr.mxu0 0.0
    %1102 = vmatpush1.msra.mxu0 0.0
    %1103 = vmatprep.subr.mxu0 0.0
    %1104 = vmatpush1.msra.mxu0 0.0
    %1105 = vmatprep.subr.mxu0 0.0
    %1106 = vmatpush1.msra.mxu0 0.0
    %1107 = vmatprep.subr.mxu0 0.0
    %1108 = vmatpush1.msra.mxu0 0.0
    %1109 = vmatprep.subr.mxu0 0.0
    %1110 = vmatpush1.msra.mxu0 0.0
    %1111 = vmatprep.subr.mxu0 0.0
    %1112 = vmatpush1.msra.mxu0 0.0
    %1113 = vmatprep.subr.mxu0 0.0
    %1114 = vmatpush1.msra.mxu0 0.0
    %1115 = vmatprep.subr.mxu0 0.0
    %1116 = vmatpush1.msra.mxu0 0.0
    %1117 = vmatprep.subr.mxu0 0.0
    %1118 = vmatpush1.msra.mxu0 0.0
    %1119 = vmatprep.subr.mxu0 0.0
    %1120 = vmatpush1.msra.mxu0 0.0
    %1121 = vmatprep.subr.mxu0 0.0
    %1122 = vmatpush1.msra.mxu0 0.0
    %1123 = vmatprep.subr.mxu0 0.0
    %1124 = vmatpush1.msra.mxu0 0.0
    %1125 = vmatprep.subr.mxu0 0.0
    %1126 = vmatpush1.msra.mxu0 0.0
    %1127 = vmatprep.subr.mxu0 0.0
    %1128 = vmatpush1.msra.mxu0 0.0
    %1129 = vmatprep.subr.mxu0 0.0
    %1130 = vmatpush1.msra.mxu0 0.0
    %1131 = vmatprep.subr.mxu0 0.0
    %1132 = vmatpush1.msra.mxu0 0.0
    %1133 = vmatprep.subr.mxu0 0.0
    %1134 = vmatpush1.msra.mxu0 0.0
    %1135 = vmatprep.subr.mxu0 0.0
    %1136 = vmatpush1.msra.mxu0 0.0
    %1137 = vmatprep.subr.mxu0 0.0
    %1138 = vmatpush1.msra.mxu0 0.0
    %1139 = vmatprep.mubr.f32.mxu0 0.0
    %1140 = vmatmul.mubr.f32.gmra.mrb[0].mxu0 %v1064
    %v1141 = vpop.f32.mrb[0].mxu0
    %v1142 = vadd.f32 0.0, %v1141
    %v1143 = vpop.f32.mrb[0].mxu0
    %1144 = vmatprep.mubr.f32.mxu0 0.0
    %1145 = vmatmul.mubr.f32.gmra.mrb[0].mxu0 %v1067
    %v1146 = vpop.f32.mrb[0].mxu0
    %v1147 = vadd.f32 0.0, %v1146
    %v1148 = vpop.f32.mrb[0].mxu0
    %1149 = vmatprep.mubr.f32.mxu0 0.0
    %1150 = vmatmul.mubr.f32.gmra.mrb[0].mxu0 %v1070
    %v1151 = vpop.f32.mrb[0].mxu0
    %v1152 = vadd.f32 0.0, %v1151
    %v1153 = vpop.f32.mrb[0].mxu0
    %1154 = vmatprep.mubr.f32.mxu0 0.0
    %1155 = vmatmul.mubr.f32.gmra.mrb[0].mxu0 %v1073
    %v1156 = vpop.f32.mrb[0].mxu0
    %v1157 = vadd.f32 0.0, %v1156
    %v1158 = vpop.f32.mrb[0].mxu0
    %1159 = vdwg.mxu0
    %v1161 = vsel %vm271, %v568, 0
    %v1164 = vsel %vm271, %v573, 0
    %v1167 = vsel %vm271, %v655, 0
    %v1170 = vsel %vm271, %v660, 0
    %1172 = vmatprep.subr.mxu0 0.0
    %1173 = vmatpush1.msra.mxu0 %v66
    %1174 = vmatprep.subr.mxu0 0.0
    %1175 = vmatpush1.msra.mxu0 0.0
    %1176 = vmatprep.subr.mxu0 0.0
    %1177 = vmatpush1.msra.mxu0 0.0
    %1178 = vmatprep.subr.mxu0 0.0
    %1179 = vmatpush1.msra.mxu0 0.0
    %1180 = vmatprep.subr.mxu0 0.0
    %1181 = vmatpush1.msra.mxu0 0.0
    %1182 = vmatprep.subr.mxu0 0.0
    %1183 = vmatpush1.msra.mxu0 0.0
    %1184 = vmatprep.subr.mxu0 0.0
    %1185 = vmatpush1.msra.mxu0 0.0
    %1186 = vmatprep.subr.mxu0 0.0
    %1187 = vmatpush1.msra.mxu0 0.0
    %1188 = vmatprep.subr.mxu0 0.0
    %1189 = vmatpush1.msra.mxu0 0.0
    %1190 = vmatprep.subr.mxu0 0.0
    %1191 = vmatpush1.msra.mxu0 0.0
    %1192 = vmatprep.subr.mxu0 0.0
    %1193 = vmatpush1.msra.mxu0 0.0
    %1194 = vmatprep.subr.mxu0 0.0
    %1195 = vmatpush1.msra.mxu0 0.0
    %1196 = vmatprep.subr.mxu0 0.0
    %1197 = vmatpush1.msra.mxu0 0.0
    %1198 = vmatprep.subr.mxu0 0.0
    %1199 = vmatpush1.msra.mxu0 0.0
    %1200 = vmatprep.subr.mxu0 0.0
    %1201 = vmatpush1.msra.mxu0 0.0
    %1202 = vmatprep.subr.mxu0 0.0
    %1203 = vmatpush1.msra.mxu0 0.0
    %1204 = vmatprep.subr.mxu0 0.0
    %1205 = vmatpush1.msra.mxu0 0.0
    %1206 = vmatprep.subr.mxu0 0.0
    %1207 = vmatpush1.msra.mxu0 0.0
    %1208 = vmatprep.subr.mxu0 0.0
    %1209 = vmatpush1.msra.mxu0 0.0
    %1210 = vmatprep.subr.mxu0 0.0
    %1211 = vmatpush1.msra.mxu0 0.0
    %1212 = vmatprep.subr.mxu0 0.0
    %1213 = vmatpush1.msra.mxu0 0.0
    %1214 = vmatprep.subr.mxu0 0.0
    %1215 = vmatpush1.msra.mxu0 0.0
    %1216 = vmatprep.subr.mxu0 0.0
    %1217 = vmatpush1.msra.mxu0 0.0
    %1218 = vmatprep.subr.mxu0 0.0
    %1219 = vmatpush1.msra.mxu0 0.0
    %1220 = vmatprep.subr.mxu0 0.0
    %1221 = vmatpush1.msra.mxu0 0.0
    %1222 = vmatprep.subr.mxu0 0.0
    %1223 = vmatpush1.msra.mxu0 0.0
    %1224 = vmatprep.subr.mxu0 0.0
    %1225 = vmatpush1.msra.mxu0 0.0
    %1226 = vmatprep.subr.mxu0 0.0
    %1227 = vmatpush1.msra.mxu0 0.0
    %1228 = vmatprep.subr.mxu0 0.0
    %1229 = vmatpush1.msra.mxu0 0.0
    %1230 = vmatprep.subr.mxu0 0.0
    %1231 = vmatpush1.msra.mxu0 0.0
    %1232 = vmatprep.subr.mxu0 0.0
    %1233 = vmatpush1.msra.mxu0 0.0
    %1234 = vmatprep.subr.mxu0 0.0
    %1235 = vmatpush1.msra.mxu0 0.0
    %1236 = vmatprep.mubr.f32.mxu0 0.0
    %1237 = vmatmul.mubr.f32.gmra.mrb[0].mxu0 %v1161
    %v1238 = vpop.f32.mrb[0].mxu0
    %v1239 = vadd.f32 %v1142, %v1238
    %v1240 = vpop.f32.mrb[0].mxu0
    %1241 = vmatprep.mubr.f32.mxu0 0.0
    %1242 = vmatmul.mubr.f32.gmra.mrb[0].mxu0 %v1164
    %v1243 = vpop.f32.mrb[0].mxu0
    %v1244 = vadd.f32 %v1147, %v1243
    %v1245 = vpop.f32.mrb[0].mxu0
    %1246 = vmatprep.mubr.f32.mxu0 0.0
    %1247 = vmatmul.mubr.f32.gmra.mrb[0].mxu0 %v1167
    %v1248 = vpop.f32.mrb[0].mxu0
    %v1249 = vadd.f32 %v1152, %v1248
    %v1250 = vpop.f32.mrb[0].mxu0
    %1251 = vmatprep.mubr.f32.mxu0 0.0
    %1252 = vmatmul.mubr.f32.gmra.mrb[0].mxu0 %v1170
    %v1253 = vpop.f32.mrb[0].mxu0
    %v1254 = vadd.f32 %v1157, %v1253
    %v1255 = vpop.f32.mrb[0].mxu0
    %1256 = vdwg.mxu0
    %1257 = vrot.lane.b32.xlu0 %v247, 112
    %v1258 = vpop.permute.xlu0 %1257
    %1259 = vrot.lane.b32.xlu0 %v252, 112
    %v1260 = vpop.permute.xlu0 %1259
    %1261 = vrot.lane.b32.xlu0 %v247, 80
    %v1262 = vpop.permute.xlu0 %1261
    %1263 = vrot.lane.b32.xlu0 %v252, 80
    %v1264 = vpop.permute.xlu0 %1263
    %v1265 = vsel %vm271, %v1258, 0
    %v1267 = vsel %vm271, %v1260, 0
    %v1269 = vsel %vm271, %v1262, 0
    %v1271 = vsel %vm271, %v1264, 0
    %1273 = vmatprep.subr.mxu0 0.0
    %1274 = vmatpush1.xpose.msra.mxu0 %v1269
    %1275 = vmatprep.subr.mxu0 0.0
    %1276 = vmatpush1.xpose.msra.mxu0 %v1271
    %1277 = vmatprep.subr.mxu0 0.0
    %1278 = vmatpush1.xpose.msra.mxu0 0.0
    %1279 = vmatprep.subr.mxu0 0.0
    %1280 = vmatpush1.xpose.msra.mxu0 0.0
    %1281 = vmatprep.subr.mxu0 0.0
    %1282 = vmatpush1.xpose.msra.mxu0 0.0
    %1283 = vmatprep.subr.mxu0 0.0
    %1284 = vmatpush1.xpose.msra.mxu0 0.0
    %1285 = vmatprep.subr.mxu0 0.0
    %1286 = vmatpush1.xpose.msra.mxu0 0.0
    %1287 = vmatprep.subr.mxu0 0.0
    %1288 = vmatpush1.xpose.msra.mxu0 0.0
    %1289 = vmatprep.subr.mxu0 0.0
    %1290 = vmatpush1.xpose.msra.mxu0 0.0
    %1291 = vmatprep.subr.mxu0 0.0
    %1292 = vmatpush1.xpose.msra.mxu0 0.0
    %1293 = vmatprep.subr.mxu0 0.0
    %1294 = vmatpush1.xpose.msra.mxu0 0.0
    %1295 = vmatprep.subr.mxu0 0.0
    %1296 = vmatpush1.xpose.msra.mxu0 0.0
    %1297 = vmatprep.subr.mxu0 0.0
    %1298 = vmatpush1.xpose.msra.mxu0 0.0
    %1299 = vmatprep.subr.mxu0 0.0
    %1300 = vmatpush1.xpose.msra.mxu0 0.0
    %1301 = vmatprep.subr.mxu0 0.0
    %1302 = vmatpush1.xpose.msra.mxu0 0.0
    %1303 = vmatprep.subr.mxu0 0.0
    %1304 = vmatpush1.xpose.msra.mxu0 0.0
    %1305 = vmatprep.subr.mxu0 0.0
    %1306 = vmatpush1.xpose.msra.mxu0 0.0
    %1307 = vmatprep.subr.mxu0 0.0
    %1308 = vmatpush1.xpose.msra.mxu0 0.0
    %1309 = vmatprep.subr.mxu0 0.0
    %1310 = vmatpush1.xpose.msra.mxu0 0.0
    %1311 = vmatprep.subr.mxu0 0.0
    %1312 = vmatpush1.xpose.msra.mxu0 0.0
    %1313 = vmatprep.subr.mxu0 0.0
    %1314 = vmatpush1.xpose.msra.mxu0 0.0
    %1315 = vmatprep.subr.mxu0 0.0
    %1316 = vmatpush1.xpose.msra.mxu0 0.0
    %1317 = vmatprep.subr.mxu0 0.0
    %1318 = vmatpush1.xpose.msra.mxu0 0.0
    %1319 = vmatprep.subr.mxu0 0.0
    %1320 = vmatpush1.xpose.msra.mxu0 0.0
    %1321 = vmatprep.subr.mxu0 0.0
    %1322 = vmatpush1.xpose.msra.mxu0 0.0
    %1323 = vmatprep.subr.mxu0 0.0
    %1324 = vmatpush1.xpose.msra.mxu0 0.0
    %1325 = vmatprep.subr.mxu0 0.0
    %1326 = vmatpush1.xpose.msra.mxu0 0.0
    %1327 = vmatprep.subr.mxu0 0.0
    %1328 = vmatpush1.xpose.msra.mxu0 0.0
    %1329 = vmatprep.subr.mxu0 0.0
    %1330 = vmatpush1.xpose.msra.mxu0 0.0
    %1331 = vmatprep.subr.mxu0 0.0
    %1332 = vmatpush1.xpose.msra.mxu0 0.0
    %1333 = vmatprep.subr.mxu0 0.0
    %1334 = vmatpush1.xpose.msra.mxu0 0.0
    %1335 = vmatprep.subr.mxu0 0.0
    %1336 = vmatpush1.xpose.msra.mxu0 0.0
    %1337 = vmatprep.mubr.f32.mxu0 0.0
    %1338 = vmatmul.mubr.f32.gmra.mrb[0].mxu0 %v1265
    %v1339 = vpop.f32.mrb[0].mxu0
    %v1340 = vadd.f32 0.0, %v1339
    %v1341 = vpop.f32.mrb[0].mxu0
    %1342 = vmatprep.mubr.f32.mxu0 0.0
    %1343 = vmatmul.mubr.f32.gmra.mrb[0].mxu0 %v1267
    %v1344 = vpop.f32.mrb[0].mxu0
    %v1345 = vadd.f32 0.0, %v1344
    %v1346 = vpop.f32.mrb[0].mxu0
    %1347 = vdwg.mxu0
    %1348 = vrot.lane.b32.xlu0 %v257, 112
    %v1349 = vpop.permute.xlu0 %1348
    %1350 = vrot.lane.b32.xlu0 %v262, 112
    %v1351 = vpop.permute.xlu0 %1350
    %1352 = vrot.lane.b32.xlu0 %v257, 80
    %v1353 = vpop.permute.xlu0 %1352
    %1354 = vrot.lane.b32.xlu0 %v262, 80
    %v1355 = vpop.permute.xlu0 %1354
    %v1356 = vsel %vm271, %v1349, 0
    %v1358 = vsel %vm271, %v1351, 0
    %v1360 = vsel %vm271, %v1353, 0
    %v1362 = vsel %vm271, %v1355, 0
    %1364 = vmatprep.subr.mxu0 0.0
    %1365 = vmatpush1.xpose.msra.mxu0 %v1360
    %1366 = vmatprep.subr.mxu0 0.0
    %1367 = vmatpush1.xpose.msra.mxu0 %v1362
    %1368 = vmatprep.subr.mxu0 0.0
    %1369 = vmatpush1.xpose.msra.mxu0 0.0
    %1370 = vmatprep.subr.mxu0 0.0
    %1371 = vmatpush1.xpose.msra.mxu0 0.0
    %1372 = vmatprep.subr.mxu0 0.0
    %1373 = vmatpush1.xpose.msra.mxu0 0.0
    %1374 = vmatprep.subr.mxu0 0.0
    %1375 = vmatpush1.xpose.msra.mxu0 0.0
    %1376 = vmatprep.subr.mxu0 0.0
    %1377 = vmatpush1.xpose.msra.mxu0 0.0
    %1378 = vmatprep.subr.mxu0 0.0
    %1379 = vmatpush1.xpose.msra.mxu0 0.0
    %1380 = vmatprep.subr.mxu0 0.0
    %1381 = vmatpush1.xpose.msra.mxu0 0.0
    %1382 = vmatprep.subr.mxu0 0.0
    %1383 = vmatpush1.xpose.msra.mxu0 0.0
    %1384 = vmatprep.subr.mxu0 0.0
    %1385 = vmatpush1.xpose.msra.mxu0 0.0
    %1386 = vmatprep.subr.mxu0 0.0
    %1387 = vmatpush1.xpose.msra.mxu0 0.0
    %1388 = vmatprep.subr.mxu0 0.0
    %1389 = vmatpush1.xpose.msra.mxu0 0.0
    %1390 = vmatprep.subr.mxu0 0.0
    %1391 = vmatpush1.xpose.msra.mxu0 0.0
    %1392 = vmatprep.subr.mxu0 0.0
    %1393 = vmatpush1.xpose.msra.mxu0 0.0
    %1394 = vmatprep.subr.mxu0 0.0
    %1395 = vmatpush1.xpose.msra.mxu0 0.0
    %1396 = vmatprep.subr.mxu0 0.0
    %1397 = vmatpush1.xpose.msra.mxu0 0.0
    %1398 = vmatprep.subr.mxu0 0.0
    %1399 = vmatpush1.xpose.msra.mxu0 0.0
    %1400 = vmatprep.subr.mxu0 0.0
    %1401 = vmatpush1.xpose.msra.mxu0 0.0
    %1402 = vmatprep.subr.mxu0 0.0
    %1403 = vmatpush1.xpose.msra.mxu0 0.0
    %1404 = vmatprep.subr.mxu0 0.0
    %1405 = vmatpush1.xpose.msra.mxu0 0.0
    %1406 = vmatprep.subr.mxu0 0.0
    %1407 = vmatpush1.xpose.msra.mxu0 0.0
    %1408 = vmatprep.subr.mxu0 0.0
    %1409 = vmatpush1.xpose.msra.mxu0 0.0
    %1410 = vmatprep.subr.mxu0 0.0
    %1411 = vmatpush1.xpose.msra.mxu0 0.0
    %1412 = vmatprep.subr.mxu0 0.0
    %1413 = vmatpush1.xpose.msra.mxu0 0.0
    %1414 = vmatprep.subr.mxu0 0.0
    %1415 = vmatpush1.xpose.msra.mxu0 0.0
    %1416 = vmatprep.subr.mxu0 0.0
    %1417 = vmatpush1.xpose.msra.mxu0 0.0
    %1418 = vmatprep.subr.mxu0 0.0
    %1419 = vmatpush1.xpose.msra.mxu0 0.0
    %1420 = vmatprep.subr.mxu0 0.0
    %1421 = vmatpush1.xpose.msra.mxu0 0.0
    %1422 = vmatprep.subr.mxu0 0.0
    %1423 = vmatpush1.xpose.msra.mxu0 0.0
    %1424 = vmatprep.subr.mxu0 0.0
    %1425 = vmatpush1.xpose.msra.mxu0 0.0
    %1426 = vmatprep.subr.mxu0 0.0
    %1427 = vmatpush1.xpose.msra.mxu0 0.0
    %1428 = vmatprep.mubr.f32.mxu0 0.0
    %1429 = vmatmul.mubr.f32.gmra.mrb[0].mxu0 %v1356
    %v1430 = vpop.f32.mrb[0].mxu0
    %v1431 = vadd.f32 0.0, %v1430
    %v1432 = vpop.f32.mrb[0].mxu0
    %1433 = vmatprep.mubr.f32.mxu0 0.0
    %1434 = vmatmul.mubr.f32.gmra.mrb[0].mxu0 %v1358
    %v1435 = vpop.f32.mrb[0].mxu0
    %v1436 = vadd.f32 0.0, %v1435
    %v1437 = vpop.f32.mrb[0].mxu0
    %1438 = vdwg.mxu0
    %v1439 = vsel %vm444, %v1340, -inf
    %1440 = vmax.xlane.f32.xlu0 %v1439
    %v1441 = vpop.xlane.xlu0 %1440
    %v1442 = vsel %vm444, %v1345, -inf
    %1443 = vmax.xlane.f32.xlu0 %v1442
    %v1444 = vpop.xlane.xlu0 %1443
    %v1445 = vsel %vm444, %v1431, -inf
    %1446 = vmax.xlane.f32.xlu0 %v1445
    %v1447 = vpop.xlane.xlu0 %1446
    %v1448 = vsel %vm444, %v1436, -inf
    %1449 = vmax.xlane.f32.xlu0 %v1448
    %v1450 = vpop.xlane.xlu0 %1449
    %v1451 = vsub.f32 %v1340, %v1441
    %v1452 = vsub.f32 %v1345, %v1444
    %v1453 = vsub.f32 %v1431, %v1447
    %v1454 = vsub.f32 %v1436, %v1450
    %v1455 = vmul.f32 %v1451, 1.442695
    %v1456 = vpow.pop %v1455
    %v1457 = vmul.f32 %v1452, 1.442695
    %v1458 = vpow.pop %v1457
    %v1459 = vmul.f32 %v1453, 1.442695
    %v1460 = vpow.pop %v1459
    %v1461 = vmul.f32 %v1454, 1.442695
    %v1462 = vpow.pop %v1461
    %v1463 = vsel %vm444, %v1456, 0.0
    %1464 = vadd.xlane.f32.xlu0 %v1463
    %v1465 = vpop.xlane.xlu0 %1464
    %v1466 = vsel %vm444, %v1458, 0.0
    %1467 = vadd.xlane.f32.xlu0 %v1466
    %v1468 = vpop.xlane.xlu0 %1467
    %v1469 = vsel %vm444, %v1460, 0.0
    %1470 = vadd.xlane.f32.xlu0 %v1469
    %v1471 = vpop.xlane.xlu0 %1470
    %v1472 = vsel %vm444, %v1462, 0.0
    %1473 = vadd.xlane.f32.xlu0 %v1472
    %v1474 = vpop.xlane.xlu0 %1473
    %v1475 = vrcp.pop %v1465
    %v1476 = vrcp.pop %v1468
    %v1477 = vrcp.pop %v1471
    %v1478 = vrcp.pop %v1474
    %v1479 = vmul.f32 %v1456, %v1475
    %v1480 = vmul.f32 %v1458, %v1476
    %v1481 = vmul.f32 %v1460, %v1477
    %v1482 = vmul.f32 %v1462, %v1478
    %1483 = vrot.lane.b32.xlu0 %v247, 48
    %v1484 = vpop.permute.xlu0 %1483
    %1485 = vrot.lane.b32.xlu0 %v252, 48
    %v1486 = vpop.permute.xlu0 %1485
    %v1490 = vsel %vm444, %v1479, 0
    %v1493 = vsel %vm444, %v1480, 0
    %1495 = vmatprep.subr.mxu0 0.0
    %1496 = vmatpush1.msra.mxu0 %v1484
    %1497 = vmatprep.subr.mxu0 0.0
    %1498 = vmatpush1.msra.mxu0 %v1486
    %1499 = vmatprep.subr.mxu0 0.0
    %1500 = vmatpush1.msra.mxu0 0.0
    %1501 = vmatprep.subr.mxu0 0.0
    %1502 = vmatpush1.msra.mxu0 0.0
    %1503 = vmatprep.subr.mxu0 0.0
    %1504 = vmatpush1.msra.mxu0 0.0
    %1505 = vmatprep.subr.mxu0 0.0
    %1506 = vmatpush1.msra.mxu0 0.0
    %1507 = vmatprep.subr.mxu0 0.0
    %1508 = vmatpush1.msra.mxu0 0.0
    %1509 = vmatprep.subr.mxu0 0.0
    %1510 = vmatpush1.msra.mxu0 0.0
    %1511 = vmatprep.subr.mxu0 0.0
    %1512 = vmatpush1.msra.mxu0 0.0
    %1513 = vmatprep.subr.mxu0 0.0
    %1514 = vmatpush1.msra.mxu0 0.0
    %1515 = vmatprep.subr.mxu0 0.0
    %1516 = vmatpush1.msra.mxu0 0.0
    %1517 = vmatprep.subr.mxu0 0.0
    %1518 = vmatpush1.msra.mxu0 0.0
    %1519 = vmatprep.subr.mxu0 0.0
    %1520 = vmatpush1.msra.mxu0 0.0
    %1521 = vmatprep.subr.mxu0 0.0
    %1522 = vmatpush1.msra.mxu0 0.0
    %1523 = vmatprep.subr.mxu0 0.0
    %1524 = vmatpush1.msra.mxu0 0.0
    %1525 = vmatprep.subr.mxu0 0.0
    %1526 = vmatpush1.msra.mxu0 0.0
    %1527 = vmatprep.subr.mxu0 0.0
    %1528 = vmatpush1.msra.mxu0 0.0
    %1529 = vmatprep.subr.mxu0 0.0
    %1530 = vmatpush1.msra.mxu0 0.0
    %1531 = vmatprep.subr.mxu0 0.0
    %1532 = vmatpush1.msra.mxu0 0.0
    %1533 = vmatprep.subr.mxu0 0.0
    %1534 = vmatpush1.msra.mxu0 0.0
    %1535 = vmatprep.subr.mxu0 0.0
    %1536 = vmatpush1.msra.mxu0 0.0
    %1537 = vmatprep.subr.mxu0 0.0
    %1538 = vmatpush1.msra.mxu0 0.0
    %1539 = vmatprep.subr.mxu0 0.0
    %1540 = vmatpush1.msra.mxu0 0.0
    %1541 = vmatprep.subr.mxu0 0.0
    %1542 = vmatpush1.msra.mxu0 0.0
    %1543 = vmatprep.subr.mxu0 0.0
    %1544 = vmatpush1.msra.mxu0 0.0
    %1545 = vmatprep.subr.mxu0 0.0
    %1546 = vmatpush1.msra.mxu0 0.0
    %1547 = vmatprep.subr.mxu0 0.0
    %1548 = vmatpush1.msra.mxu0 0.0
    %1549 = vmatprep.subr.mxu0 0.0
    %1550 = vmatpush1.msra.mxu0 0.0
    %1551 = vmatprep.subr.mxu0 0.0
    %1552 = vmatpush1.msra.mxu0 0.0
    %1553 = vmatprep.subr.mxu0 0.0
    %1554 = vmatpush1.msra.mxu0 0.0
    %1555 = vmatprep.subr.mxu0 0.0
    %1556 = vmatpush1.msra.mxu0 0.0
    %1557 = vmatprep.subr.mxu0 0.0
    %1558 = vmatpush1.msra.mxu0 0.0
    %1559 = vmatprep.mubr.f32.mxu0 0.0
    %1560 = vmatmul.mubr.f32.gmra.mrb[0].mxu0 %v1490
    %v1561 = vpop.f32.mrb[0].mxu0
    %v1562 = vadd.f32 0.0, %v1561
    %v1563 = vpop.f32.mrb[0].mxu0
    %1564 = vmatprep.mubr.f32.mxu0 0.0
    %1565 = vmatmul.mubr.f32.gmra.mrb[0].mxu0 %v1493
    %v1566 = vpop.f32.mrb[0].mxu0
    %v1567 = vadd.f32 0.0, %v1566
    %v1568 = vpop.f32.mrb[0].mxu0
    %1569 = vdwg.mxu0
    %1570 = vrot.lane.b32.xlu0 %v257, 48
    %v1571 = vpop.permute.xlu0 %1570
    %1572 = vrot.lane.b32.xlu0 %v262, 48
    %v1573 = vpop.permute.xlu0 %1572
    %v1577 = vsel %vm444, %v1481, 0
    %v1580 = vsel %vm444, %v1482, 0
    %1582 = vmatprep.subr.mxu0 0.0
    %1583 = vmatpush1.msra.mxu0 %v1571
    %1584 = vmatprep.subr.mxu0 0.0
    %1585 = vmatpush1.msra.mxu0 %v1573
    %1586 = vmatprep.subr.mxu0 0.0
    %1587 = vmatpush1.msra.mxu0 0.0
    %1588 = vmatprep.subr.mxu0 0.0
    %1589 = vmatpush1.msra.mxu0 0.0
    %1590 = vmatprep.subr.mxu0 0.0
    %1591 = vmatpush1.msra.mxu0 0.0
    %1592 = vmatprep.subr.mxu0 0.0
    %1593 = vmatpush1.msra.mxu0 0.0
    %1594 = vmatprep.subr.mxu0 0.0
    %1595 = vmatpush1.msra.mxu0 0.0
    %1596 = vmatprep.subr.mxu0 0.0
    %1597 = vmatpush1.msra.mxu0 0.0
    %1598 = vmatprep.subr.mxu0 0.0
    %1599 = vmatpush1.msra.mxu0 0.0
    %1600 = vmatprep.subr.mxu0 0.0
    %1601 = vmatpush1.msra.mxu0 0.0
    %1602 = vmatprep.subr.mxu0 0.0
    %1603 = vmatpush1.msra.mxu0 0.0
    %1604 = vmatprep.subr.mxu0 0.0
    %1605 = vmatpush1.msra.mxu0 0.0
    %1606 = vmatprep.subr.mxu0 0.0
    %1607 = vmatpush1.msra.mxu0 0.0
    %1608 = vmatprep.subr.mxu0 0.0
    %1609 = vmatpush1.msra.mxu0 0.0
    %1610 = vmatprep.subr.mxu0 0.0
    %1611 = vmatpush1.msra.mxu0 0.0
    %1612 = vmatprep.subr.mxu0 0.0
    %1613 = vmatpush1.msra.mxu0 0.0
    %1614 = vmatprep.subr.mxu0 0.0
    %1615 = vmatpush1.msra.mxu0 0.0
    %1616 = vmatprep.subr.mxu0 0.0
    %1617 = vmatpush1.msra.mxu0 0.0
    %1618 = vmatprep.subr.mxu0 0.0
    %1619 = vmatpush1.msra.mxu0 0.0
    %1620 = vmatprep.subr.mxu0 0.0
    %1621 = vmatpush1.msra.mxu0 0.0
    %1622 = vmatprep.subr.mxu0 0.0
    %1623 = vmatpush1.msra.mxu0 0.0
    %1624 = vmatprep.subr.mxu0 0.0
    %1625 = vmatpush1.msra.mxu0 0.0
    %1626 = vmatprep.subr.mxu0 0.0
    %1627 = vmatpush1.msra.mxu0 0.0
    %1628 = vmatprep.subr.mxu0 0.0
    %1629 = vmatpush1.msra.mxu0 0.0
    %1630 = vmatprep.subr.mxu0 0.0
    %1631 = vmatpush1.msra.mxu0 0.0
    %1632 = vmatprep.subr.mxu0 0.0
    %1633 = vmatpush1.msra.mxu0 0.0
    %1634 = vmatprep.subr.mxu0 0.0
    %1635 = vmatpush1.msra.mxu0 0.0
    %1636 = vmatprep.subr.mxu0 0.0
    %1637 = vmatpush1.msra.mxu0 0.0
    %1638 = vmatprep.subr.mxu0 0.0
    %1639 = vmatpush1.msra.mxu0 0.0
    %1640 = vmatprep.subr.mxu0 0.0
    %1641 = vmatpush1.msra.mxu0 0.0
    %1642 = vmatprep.subr.mxu0 0.0
    %1643 = vmatpush1.msra.mxu0 0.0
    %1644 = vmatprep.subr.mxu0 0.0
    %1645 = vmatpush1.msra.mxu0 0.0
    %1646 = vmatprep.mubr.f32.mxu0 0.0
    %1647 = vmatmul.mubr.f32.gmra.mrb[0].mxu0 %v1577
    %v1648 = vpop.f32.mrb[0].mxu0
    %v1649 = vadd.f32 0.0, %v1648
    %v1650 = vpop.f32.mrb[0].mxu0
    %1651 = vmatprep.mubr.f32.mxu0 0.0
    %1652 = vmatmul.mubr.f32.gmra.mrb[0].mxu0 %v1580
    %v1653 = vpop.f32.mrb[0].mxu0
    %v1654 = vadd.f32 0.0, %v1653
    %v1655 = vpop.f32.mrb[0].mxu0
    %1656 = vdwg.mxu0
    %v1658 = vsel %vm271, %v1562, 0
    %v1661 = vsel %vm271, %v1567, 0
    %v1664 = vsel %vm271, %v1649, 0
    %v1667 = vsel %vm271, %v1654, 0
    %1669 = vmatprep.subr.mxu0 0.0
    %1670 = vmatpush1.msra.mxu0 %v68
    %1671 = vmatprep.subr.mxu0 0.0
    %1672 = vmatpush1.msra.mxu0 0.0
    %1673 = vmatprep.subr.mxu0 0.0
    %1674 = vmatpush1.msra.mxu0 0.0
    %1675 = vmatprep.subr.mxu0 0.0
    %1676 = vmatpush1.msra.mxu0 0.0
    %1677 = vmatprep.subr.mxu0 0.0
    %1678 = vmatpush1.msra.mxu0 0.0
    %1679 = vmatprep.subr.mxu0 0.0
    %1680 = vmatpush1.msra.mxu0 0.0
    %1681 = vmatprep.subr.mxu0 0.0
    %1682 = vmatpush1.msra.mxu0 0.0
    %1683 = vmatprep.subr.mxu0 0.0
    %1684 = vmatpush1.msra.mxu0 0.0
    %1685 = vmatprep.subr.mxu0 0.0
    %1686 = vmatpush1.msra.mxu0 0.0
    %1687 = vmatprep.subr.mxu0 0.0
    %1688 = vmatpush1.msra.mxu0 0.0
    %1689 = vmatprep.subr.mxu0 0.0
    %1690 = vmatpush1.msra.mxu0 0.0
    %1691 = vmatprep.subr.mxu0 0.0
    %1692 = vmatpush1.msra.mxu0 0.0
    %1693 = vmatprep.subr.mxu0 0.0
    %1694 = vmatpush1.msra.mxu0 0.0
    %1695 = vmatprep.subr.mxu0 0.0
    %1696 = vmatpush1.msra.mxu0 0.0
    %1697 = vmatprep.subr.mxu0 0.0
    %1698 = vmatpush1.msra.mxu0 0.0
    %1699 = vmatprep.subr.mxu0 0.0
    %1700 = vmatpush1.msra.mxu0 0.0
    %1701 = vmatprep.subr.mxu0 0.0
    %1702 = vmatpush1.msra.mxu0 0.0
    %1703 = vmatprep.subr.mxu0 0.0
    %1704 = vmatpush1.msra.mxu0 0.0
    %1705 = vmatprep.subr.mxu0 0.0
    %1706 = vmatpush1.msra.mxu0 0.0
    %1707 = vmatprep.subr.mxu0 0.0
    %1708 = vmatpush1.msra.mxu0 0.0
    %1709 = vmatprep.subr.mxu0 0.0
    %1710 = vmatpush1.msra.mxu0 0.0
    %1711 = vmatprep.subr.mxu0 0.0
    %1712 = vmatpush1.msra.mxu0 0.0
    %1713 = vmatprep.subr.mxu0 0.0
    %1714 = vmatpush1.msra.mxu0 0.0
    %1715 = vmatprep.subr.mxu0 0.0
    %1716 = vmatpush1.msra.mxu0 0.0
    %1717 = vmatprep.subr.mxu0 0.0
    %1718 = vmatpush1.msra.mxu0 0.0
    %1719 = vmatprep.subr.mxu0 0.0
    %1720 = vmatpush1.msra.mxu0 0.0
    %1721 = vmatprep.subr.mxu0 0.0
    %1722 = vmatpush1.msra.mxu0 0.0
    %1723 = vmatprep.subr.mxu0 0.0
    %1724 = vmatpush1.msra.mxu0 0.0
    %1725 = vmatprep.subr.mxu0 0.0
    %1726 = vmatpush1.msra.mxu0 0.0
    %1727 = vmatprep.subr.mxu0 0.0
    %1728 = vmatpush1.msra.mxu0 0.0
    %1729 = vmatprep.subr.mxu0 0.0
    %1730 = vmatpush1.msra.mxu0 0.0
    %1731 = vmatprep.subr.mxu0 0.0
    %1732 = vmatpush1.msra.mxu0 0.0
    %1733 = vmatprep.mubr.f32.mxu0 0.0
    %1734 = vmatmul.mubr.f32.gmra.mrb[0].mxu0 %v1658
    %v1735 = vpop.f32.mrb[0].mxu0
    %v1736 = vadd.f32 0.0, %v1735
    %v1737 = vpop.f32.mrb[0].mxu0
    %1738 = vmatprep.mubr.f32.mxu0 0.0
    %1739 = vmatmul.mubr.f32.gmra.mrb[0].mxu0 %v1661
    %v1740 = vpop.f32.mrb[0].mxu0
    %v1741 = vadd.f32 0.0, %v1740
    %v1742 = vpop.f32.mrb[0].mxu0
    %1743 = vmatprep.mubr.f32.mxu0 0.0
    %1744 = vmatmul.mubr.f32.gmra.mrb[0].mxu0 %v1664
    %v1745 = vpop.f32.mrb[0].mxu0
    %v1746 = vadd.f32 0.0, %v1745
    %v1747 = vpop.f32.mrb[0].mxu0
    %1748 = vmatprep.mubr.f32.mxu0 0.0
    %1749 = vmatmul.mubr.f32.gmra.mrb[0].mxu0 %v1667
    %v1750 = vpop.f32.mrb[0].mxu0
    %v1751 = vadd.f32 0.0, %v1750
    %v1752 = vpop.f32.mrb[0].mxu0
    %1753 = vdwg.mxu0
    %v1754 = vadd.f32 %v1239, %v1736
    %v1755 = vadd.f32 %v1244, %v1741
    %v1756 = vadd.f32 %v1249, %v1746
    %v1757 = vadd.f32 %v1254, %v1751
    %1758 = vrot.lane.b32.xlu0 %v247, 104
    %v1759 = vpop.permute.xlu0 %1758
    %1760 = vrot.lane.b32.xlu0 %v252, 104
    %v1761 = vpop.permute.xlu0 %1760
    %1762 = vrot.lane.b32.xlu0 %v247, 72
    %v1763 = vpop.permute.xlu0 %1762
    %1764 = vrot.lane.b32.xlu0 %v252, 72
    %v1765 = vpop.permute.xlu0 %1764
    %v1766 = vsel %vm271, %v1759, 0
    %v1768 = vsel %vm271, %v1761, 0
    %v1770 = vsel %vm271, %v1763, 0
    %v1772 = vsel %vm271, %v1765, 0
    %1774 = vmatprep.subr.mxu0 0.0
    %1775 = vmatpush1.xpose.msra.mxu0 %v1770
    %1776 = vmatprep.subr.mxu0 0.0
    %1777 = vmatpush1.xpose.msra.mxu0 %v1772
    %1778 = vmatprep.subr.mxu0 0.0
    %1779 = vmatpush1.xpose.msra.mxu0 0.0
    %1780 = vmatprep.subr.mxu0 0.0
    %1781 = vmatpush1.xpose.msra.mxu0 0.0
    %1782 = vmatprep.subr.mxu0 0.0
    %1783 = vmatpush1.xpose.msra.mxu0 0.0
    %1784 = vmatprep.subr.mxu0 0.0
    %1785 = vmatpush1.xpose.msra.mxu0 0.0
    %1786 = vmatprep.subr.mxu0 0.0
    %1787 = vmatpush1.xpose.msra.mxu0 0.0
    %1788 = vmatprep.subr.mxu0 0.0
    %1789 = vmatpush1.xpose.msra.mxu0 0.0
    %1790 = vmatprep.subr.mxu0 0.0
    %1791 = vmatpush1.xpose.msra.mxu0 0.0
    %1792 = vmatprep.subr.mxu0 0.0
    %1793 = vmatpush1.xpose.msra.mxu0 0.0
    %1794 = vmatprep.subr.mxu0 0.0
    %1795 = vmatpush1.xpose.msra.mxu0 0.0
    %1796 = vmatprep.subr.mxu0 0.0
    %1797 = vmatpush1.xpose.msra.mxu0 0.0
    %1798 = vmatprep.subr.mxu0 0.0
    %1799 = vmatpush1.xpose.msra.mxu0 0.0
    %1800 = vmatprep.subr.mxu0 0.0
    %1801 = vmatpush1.xpose.msra.mxu0 0.0
    %1802 = vmatprep.subr.mxu0 0.0
    %1803 = vmatpush1.xpose.msra.mxu0 0.0
    %1804 = vmatprep.subr.mxu0 0.0
    %1805 = vmatpush1.xpose.msra.mxu0 0.0
    %1806 = vmatprep.subr.mxu0 0.0
    %1807 = vmatpush1.xpose.msra.mxu0 0.0
    %1808 = vmatprep.subr.mxu0 0.0
    %1809 = vmatpush1.xpose.msra.mxu0 0.0
    %1810 = vmatprep.subr.mxu0 0.0
    %1811 = vmatpush1.xpose.msra.mxu0 0.0
    %1812 = vmatprep.subr.mxu0 0.0
    %1813 = vmatpush1.xpose.msra.mxu0 0.0
    %1814 = vmatprep.subr.mxu0 0.0
    %1815 = vmatpush1.xpose.msra.mxu0 0.0
    %1816 = vmatprep.subr.mxu0 0.0
    %1817 = vmatpush1.xpose.msra.mxu0 0.0
    %1818 = vmatprep.subr.mxu0 0.0
    %1819 = vmatpush1.xpose.msra.mxu0 0.0
    %1820 = vmatprep.subr.mxu0 0.0
    %1821 = vmatpush1.xpose.msra.mxu0 0.0
    %1822 = vmatprep.subr.mxu0 0.0
    %1823 = vmatpush1.xpose.msra.mxu0 0.0
    %1824 = vmatprep.subr.mxu0 0.0
    %1825 = vmatpush1.xpose.msra.mxu0 0.0
    %1826 = vmatprep.subr.mxu0 0.0
    %1827 = vmatpush1.xpose.msra.mxu0 0.0
    %1828 = vmatprep.subr.mxu0 0.0
    %1829 = vmatpush1.xpose.msra.mxu0 0.0
    %1830 = vmatprep.subr.mxu0 0.0
    %1831 = vmatpush1.xpose.msra.mxu0 0.0
    %1832 = vmatprep.subr.mxu0 0.0
    %1833 = vmatpush1.xpose.msra.mxu0 0.0
    %1834 = vmatprep.subr.mxu0 0.0
    %1835 = vmatpush1.xpose.msra.mxu0 0.0
    %1836 = vmatprep.subr.mxu0 0.0
    %1837 = vmatpush1.xpose.msra.mxu0 0.0
    %1838 = vmatprep.mubr.f32.mxu0 0.0
    %1839 = vmatmul.mubr.f32.gmra.mrb[0].mxu0 %v1766
    %v1840 = vpop.f32.mrb[0].mxu0
    %v1841 = vadd.f32 0.0, %v1840
    %v1842 = vpop.f32.mrb[0].mxu0
    %1843 = vmatprep.mubr.f32.mxu0 0.0
    %1844 = vmatmul.mubr.f32.gmra.mrb[0].mxu0 %v1768
    %v1845 = vpop.f32.mrb[0].mxu0
    %v1846 = vadd.f32 0.0, %v1845
    %v1847 = vpop.f32.mrb[0].mxu0
    %1848 = vdwg.mxu0
    %1849 = vrot.lane.b32.xlu0 %v257, 104
    %v1850 = vpop.permute.xlu0 %1849
    %1851 = vrot.lane.b32.xlu0 %v262, 104
    %v1852 = vpop.permute.xlu0 %1851
    %1853 = vrot.lane.b32.xlu0 %v257, 72
    %v1854 = vpop.permute.xlu0 %1853
    %1855 = vrot.lane.b32.xlu0 %v262, 72
    %v1856 = vpop.permute.xlu0 %1855
    %v1857 = vsel %vm271, %v1850, 0
    %v1859 = vsel %vm271, %v1852, 0
    %v1861 = vsel %vm271, %v1854, 0
    %v1863 = vsel %vm271, %v1856, 0
    %1865 = vmatprep.subr.mxu0 0.0
    %1866 = vmatpush1.xpose.msra.mxu0 %v1861
    %1867 = vmatprep.subr.mxu0 0.0
    %1868 = vmatpush1.xpose.msra.mxu0 %v1863
    %1869 = vmatprep.subr.mxu0 0.0
    %1870 = vmatpush1.xpose.msra.mxu0 0.0
    %1871 = vmatprep.subr.mxu0 0.0
    %1872 = vmatpush1.xpose.msra.mxu0 0.0
    %1873 = vmatprep.subr.mxu0 0.0
    %1874 = vmatpush1.xpose.msra.mxu0 0.0
    %1875 = vmatprep.subr.mxu0 0.0
    %1876 = vmatpush1.xpose.msra.mxu0 0.0
    %1877 = vmatprep.subr.mxu0 0.0
    %1878 = vmatpush1.xpose.msra.mxu0 0.0
    %1879 = vmatprep.subr.mxu0 0.0
    %1880 = vmatpush1.xpose.msra.mxu0 0.0
    %1881 = vmatprep.subr.mxu0 0.0
    %1882 = vmatpush1.xpose.msra.mxu0 0.0
    %1883 = vmatprep.subr.mxu0 0.0
    %1884 = vmatpush1.xpose.msra.mxu0 0.0
    %1885 = vmatprep.subr.mxu0 0.0
    %1886 = vmatpush1.xpose.msra.mxu0 0.0
    %1887 = vmatprep.subr.mxu0 0.0
    %1888 = vmatpush1.xpose.msra.mxu0 0.0
    %1889 = vmatprep.subr.mxu0 0.0
    %1890 = vmatpush1.xpose.msra.mxu0 0.0
    %1891 = vmatprep.subr.mxu0 0.0
    %1892 = vmatpush1.xpose.msra.mxu0 0.0
    %1893 = vmatprep.subr.mxu0 0.0
    %1894 = vmatpush1.xpose.msra.mxu0 0.0
    %1895 = vmatprep.subr.mxu0 0.0
    %1896 = vmatpush1.xpose.msra.mxu0 0.0
    %1897 = vmatprep.subr.mxu0 0.0
    %1898 = vmatpush1.xpose.msra.mxu0 0.0
    %1899 = vmatprep.subr.mxu0 0.0
    %1900 = vmatpush1.xpose.msra.mxu0 0.0
    %1901 = vmatprep.subr.mxu0 0.0
    %1902 = vmatpush1.xpose.msra.mxu0 0.0
    %1903 = vmatprep.subr.mxu0 0.0
    %1904 = vmatpush1.xpose.msra.mxu0 0.0
    %1905 = vmatprep.subr.mxu0 0.0
    %1906 = vmatpush1.xpose.msra.mxu0 0.0
    %1907 = vmatprep.subr.mxu0 0.0
    %1908 = vmatpush1.xpose.msra.mxu0 0.0
    %1909 = vmatprep.subr.mxu0 0.0
    %1910 = vmatpush1.xpose.msra.mxu0 0.0
    %1911 = vmatprep.subr.mxu0 0.0
    %1912 = vmatpush1.xpose.msra.mxu0 0.0
    %1913 = vmatprep.subr.mxu0 0.0
    %1914 = vmatpush1.xpose.msra.mxu0 0.0
    %1915 = vmatprep.subr.mxu0 0.0
    %1916 = vmatpush1.xpose.msra.mxu0 0.0
    %1917 = vmatprep.subr.mxu0 0.0
    %1918 = vmatpush1.xpose.msra.mxu0 0.0
    %1919 = vmatprep.subr.mxu0 0.0
    %1920 = vmatpush1.xpose.msra.mxu0 0.0
    %1921 = vmatprep.subr.mxu0 0.0
    %1922 = vmatpush1.xpose.msra.mxu0 0.0
    %1923 = vmatprep.subr.mxu0 0.0
    %1924 = vmatpush1.xpose.msra.mxu0 0.0
    %1925 = vmatprep.subr.mxu0 0.0
    %1926 = vmatpush1.xpose.msra.mxu0 0.0
    %1927 = vmatprep.subr.mxu0 0.0
    %1928 = vmatpush1.xpose.msra.mxu0 0.0
    %1929 = vmatprep.mubr.f32.mxu0 0.0
    %1930 = vmatmul.mubr.f32.gmra.mrb[0].mxu0 %v1857
    %v1931 = vpop.f32.mrb[0].mxu0
    %v1932 = vadd.f32 0.0, %v1931
    %v1933 = vpop.f32.mrb[0].mxu0
    %1934 = vmatprep.mubr.f32.mxu0 0.0
    %1935 = vmatmul.mubr.f32.gmra.mrb[0].mxu0 %v1859
    %v1936 = vpop.f32.mrb[0].mxu0
    %v1937 = vadd.f32 0.0, %v1936
    %v1938 = vpop.f32.mrb[0].mxu0
    %1939 = vdwg.mxu0
    %v1940 = vsel %vm444, %v1841, -inf
    %1941 = vmax.xlane.f32.xlu0 %v1940
    %v1942 = vpop.xlane.xlu0 %1941
    %v1943 = vsel %vm444, %v1846, -inf
    %1944 = vmax.xlane.f32.xlu0 %v1943
    %v1945 = vpop.xlane.xlu0 %1944
    %v1946 = vsel %vm444, %v1932, -inf
    %1947 = vmax.xlane.f32.xlu0 %v1946
    %v1948 = vpop.xlane.xlu0 %1947
    %v1949 = vsel %vm444, %v1937, -inf
    %1950 = vmax.xlane.f32.xlu0 %v1949
    %v1951 = vpop.xlane.xlu0 %1950
    %v1952 = vsub.f32 %v1841, %v1942
    %v1953 = vsub.f32 %v1846, %v1945
    %v1954 = vsub.f32 %v1932, %v1948
    %v1955 = vsub.f32 %v1937, %v1951
    %v1956 = vmul.f32 %v1952, 1.442695
    %v1957 = vpow.pop %v1956
    %v1958 = vmul.f32 %v1953, 1.442695
    %v1959 = vpow.pop %v1958
    %v1960 = vmul.f32 %v1954, 1.442695
    %v1961 = vpow.pop %v1960
    %v1962 = vmul.f32 %v1955, 1.442695
    %v1963 = vpow.pop %v1962
    %v1964 = vsel %vm444, %v1957, 0.0
    %1965 = vadd.xlane.f32.xlu0 %v1964
    %v1966 = vpop.xlane.xlu0 %1965
    %v1967 = vsel %vm444, %v1959, 0.0
    %1968 = vadd.xlane.f32.xlu0 %v1967
    %v1969 = vpop.xlane.xlu0 %1968
    %v1970 = vsel %vm444, %v1961, 0.0
    %1971 = vadd.xlane.f32.xlu0 %v1970
    %v1972 = vpop.xlane.xlu0 %1971
    %v1973 = vsel %vm444, %v1963, 0.0
    %1974 = vadd.xlane.f32.xlu0 %v1973
    %v1975 = vpop.xlane.xlu0 %1974
    %v1976 = vrcp.pop %v1966
    %v1977 = vrcp.pop %v1969
    %v1978 = vrcp.pop %v1972
    %v1979 = vrcp.pop %v1975
    %v1980 = vmul.f32 %v1957, %v1976
    %v1981 = vmul.f32 %v1959, %v1977
    %v1982 = vmul.f32 %v1961, %v1978
    %v1983 = vmul.f32 %v1963, %v1979
    %1984 = vrot.lane.b32.xlu0 %v247, 40
    %v1985 = vpop.permute.xlu0 %1984
    %1986 = vrot.lane.b32.xlu0 %v252, 40
    %v1987 = vpop.permute.xlu0 %1986
    %v1991 = vsel %vm444, %v1980, 0
    %v1994 = vsel %vm444, %v1981, 0
    %1996 = vmatprep.subr.mxu0 0.0
    %1997 = vmatpush1.msra.mxu0 %v1985
    %1998 = vmatprep.subr.mxu0 0.0
    %1999 = vmatpush1.msra.mxu0 %v1987
    %2000 = vmatprep.subr.mxu0 0.0
    %2001 = vmatpush1.msra.mxu0 0.0
    %2002 = vmatprep.subr.mxu0 0.0
    %2003 = vmatpush1.msra.mxu0 0.0
    %2004 = vmatprep.subr.mxu0 0.0
    %2005 = vmatpush1.msra.mxu0 0.0
    %2006 = vmatprep.subr.mxu0 0.0
    %2007 = vmatpush1.msra.mxu0 0.0
    %2008 = vmatprep.subr.mxu0 0.0
    %2009 = vmatpush1.msra.mxu0 0.0
    %2010 = vmatprep.subr.mxu0 0.0
    %2011 = vmatpush1.msra.mxu0 0.0
    %2012 = vmatprep.subr.mxu0 0.0
    %2013 = vmatpush1.msra.mxu0 0.0
    %2014 = vmatprep.subr.mxu0 0.0
    %2015 = vmatpush1.msra.mxu0 0.0
    %2016 = vmatprep.subr.mxu0 0.0
    %2017 = vmatpush1.msra.mxu0 0.0
    %2018 = vmatprep.subr.mxu0 0.0
    %2019 = vmatpush1.msra.mxu0 0.0
    %2020 = vmatprep.subr.mxu0 0.0
    %2021 = vmatpush1.msra.mxu0 0.0
    %2022 = vmatprep.subr.mxu0 0.0
    %2023 = vmatpush1.msra.mxu0 0.0
    %2024 = vmatprep.subr.mxu0 0.0
    %2025 = vmatpush1.msra.mxu0 0.0
    %2026 = vmatprep.subr.mxu0 0.0
    %2027 = vmatpush1.msra.mxu0 0.0
    %2028 = vmatprep.subr.mxu0 0.0
    %2029 = vmatpush1.msra.mxu0 0.0
    %2030 = vmatprep.subr.mxu0 0.0
    %2031 = vmatpush1.msra.mxu0 0.0
    %2032 = vmatprep.subr.mxu0 0.0
    %2033 = vmatpush1.msra.mxu0 0.0
    %2034 = vmatprep.subr.mxu0 0.0
    %2035 = vmatpush1.msra.mxu0 0.0
    %2036 = vmatprep.subr.mxu0 0.0
    %2037 = vmatpush1.msra.mxu0 0.0
    %2038 = vmatprep.subr.mxu0 0.0
    %2039 = vmatpush1.msra.mxu0 0.0
    %2040 = vmatprep.subr.mxu0 0.0
    %2041 = vmatpush1.msra.mxu0 0.0
    %2042 = vmatprep.subr.mxu0 0.0
    %2043 = vmatpush1.msra.mxu0 0.0
    %2044 = vmatprep.subr.mxu0 0.0
    %2045 = vmatpush1.msra.mxu0 0.0
    %2046 = vmatprep.subr.mxu0 0.0
    %2047 = vmatpush1.msra.mxu0 0.0
    %2048 = vmatprep.subr.mxu0 0.0
    %2049 = vmatpush1.msra.mxu0 0.0
    %2050 = vmatprep.subr.mxu0 0.0
    %2051 = vmatpush1.msra.mxu0 0.0
    %2052 = vmatprep.subr.mxu0 0.0
    %2053 = vmatpush1.msra.mxu0 0.0
    %2054 = vmatprep.subr.mxu0 0.0
    %2055 = vmatpush1.msra.mxu0 0.0
    %2056 = vmatprep.subr.mxu0 0.0
    %2057 = vmatpush1.msra.mxu0 0.0
    %2058 = vmatprep.subr.mxu0 0.0
    %2059 = vmatpush1.msra.mxu0 0.0
    %2060 = vmatprep.mubr.f32.mxu0 0.0
    %2061 = vmatmul.mubr.f32.gmra.mrb[0].mxu0 %v1991
    %v2062 = vpop.f32.mrb[0].mxu0
    %v2063 = vadd.f32 0.0, %v2062
    %v2064 = vpop.f32.mrb[0].mxu0
    %2065 = vmatprep.mubr.f32.mxu0 0.0
    %2066 = vmatmul.mubr.f32.gmra.mrb[0].mxu0 %v1994
    %v2067 = vpop.f32.mrb[0].mxu0
    %v2068 = vadd.f32 0.0, %v2067
    %v2069 = vpop.f32.mrb[0].mxu0
    %2070 = vdwg.mxu0
    %2071 = vrot.lane.b32.xlu0 %v257, 40
    %v2072 = vpop.permute.xlu0 %2071
    %2073 = vrot.lane.b32.xlu0 %v262, 40
    %v2074 = vpop.permute.xlu0 %2073
    %v2078 = vsel %vm444, %v1982, 0
    %v2081 = vsel %vm444, %v1983, 0
    %2083 = vmatprep.subr.mxu0 0.0
    %2084 = vmatpush1.msra.mxu0 %v2072
    %2085 = vmatprep.subr.mxu0 0.0
    %2086 = vmatpush1.msra.mxu0 %v2074
    %2087 = vmatprep.subr.mxu0 0.0
    %2088 = vmatpush1.msra.mxu0 0.0
    %2089 = vmatprep.subr.mxu0 0.0
    %2090 = vmatpush1.msra.mxu0 0.0
    %2091 = vmatprep.subr.mxu0 0.0
    %2092 = vmatpush1.msra.mxu0 0.0
    %2093 = vmatprep.subr.mxu0 0.0
    %2094 = vmatpush1.msra.mxu0 0.0
    %2095 = vmatprep.subr.mxu0 0.0
    %2096 = vmatpush1.msra.mxu0 0.0
    %2097 = vmatprep.subr.mxu0 0.0
    %2098 = vmatpush1.msra.mxu0 0.0
    %2099 = vmatprep.subr.mxu0 0.0
    %2100 = vmatpush1.msra.mxu0 0.0
    %2101 = vmatprep.subr.mxu0 0.0
    %2102 = vmatpush1.msra.mxu0 0.0
    %2103 = vmatprep.subr.mxu0 0.0
    %2104 = vmatpush1.msra.mxu0 0.0
    %2105 = vmatprep.subr.mxu0 0.0
    %2106 = vmatpush1.msra.mxu0 0.0
    %2107 = vmatprep.subr.mxu0 0.0
    %2108 = vmatpush1.msra.mxu0 0.0
    %2109 = vmatprep.subr.mxu0 0.0
    %2110 = vmatpush1.msra.mxu0 0.0
    %2111 = vmatprep.subr.mxu0 0.0
    %2112 = vmatpush1.msra.mxu0 0.0
    %2113 = vmatprep.subr.mxu0 0.0
    %2114 = vmatpush1.msra.mxu0 0.0
    %2115 = vmatprep.subr.mxu0 0.0
    %2116 = vmatpush1.msra.mxu0 0.0
    %2117 = vmatprep.subr.mxu0 0.0
    %2118 = vmatpush1.msra.mxu0 0.0
    %2119 = vmatprep.subr.mxu0 0.0
    %2120 = vmatpush1.msra.mxu0 0.0
    %2121 = vmatprep.subr.mxu0 0.0
    %2122 = vmatpush1.msra.mxu0 0.0
    %2123 = vmatprep.subr.mxu0 0.0
    %2124 = vmatpush1.msra.mxu0 0.0
    %2125 = vmatprep.subr.mxu0 0.0
    %2126 = vmatpush1.msra.mxu0 0.0
    %2127 = vmatprep.subr.mxu0 0.0
    %2128 = vmatpush1.msra.mxu0 0.0
    %2129 = vmatprep.subr.mxu0 0.0
    %2130 = vmatpush1.msra.mxu0 0.0
    %2131 = vmatprep.subr.mxu0 0.0
    %2132 = vmatpush1.msra.mxu0 0.0
    %2133 = vmatprep.subr.mxu0 0.0
    %2134 = vmatpush1.msra.mxu0 0.0
    %2135 = vmatprep.subr.mxu0 0.0
    %2136 = vmatpush1.msra.mxu0 0.0
    %2137 = vmatprep.subr.mxu0 0.0
    %2138 = vmatpush1.msra.mxu0 0.0
    %2139 = vmatprep.subr.mxu0 0.0
    %2140 = vmatpush1.msra.mxu0 0.0
    %2141 = vmatprep.subr.mxu0 0.0
    %2142 = vmatpush1.msra.mxu0 0.0
    %2143 = vmatprep.subr.mxu0 0.0
    %2144 = vmatpush1.msra.mxu0 0.0
    %2145 = vmatprep.subr.mxu0 0.0
    %2146 = vmatpush1.msra.mxu0 0.0
    %2147 = vmatprep.mubr.f32.mxu0 0.0
    %2148 = vmatmul.mubr.f32.gmra.mrb[0].mxu0 %v2078
    %v2149 = vpop.f32.mrb[0].mxu0
    %v2150 = vadd.f32 0.0, %v2149
    %v2151 = vpop.f32.mrb[0].mxu0
    %2152 = vmatprep.mubr.f32.mxu0 0.0
    %2153 = vmatmul.mubr.f32.gmra.mrb[0].mxu0 %v2081
    %v2154 = vpop.f32.mrb[0].mxu0
    %v2155 = vadd.f32 0.0, %v2154
    %v2156 = vpop.f32.mrb[0].mxu0
    %2157 = vdwg.mxu0
    %v2159 = vsel %vm271, %v2063, 0
    %v2162 = vsel %vm271, %v2068, 0
    %v2165 = vsel %vm271, %v2150, 0
    %v2168 = vsel %vm271, %v2155, 0
    %2170 = vmatprep.subr.mxu0 0.0
    %2171 = vmatpush1.msra.mxu0 %v69
    %2172 = vmatprep.subr.mxu0 0.0
    %2173 = vmatpush1.msra.mxu0 0.0
    %2174 = vmatprep.subr.mxu0 0.0
    %2175 = vmatpush1.msra.mxu0 0.0
    %2176 = vmatprep.subr.mxu0 0.0
    %2177 = vmatpush1.msra.mxu0 0.0
    %2178 = vmatprep.subr.mxu0 0.0
    %2179 = vmatpush1.msra.mxu0 0.0
    %2180 = vmatprep.subr.mxu0 0.0
    %2181 = vmatpush1.msra.mxu0 0.0
    %2182 = vmatprep.subr.mxu0 0.0
    %2183 = vmatpush1.msra.mxu0 0.0
    %2184 = vmatprep.subr.mxu0 0.0
    %2185 = vmatpush1.msra.mxu0 0.0
    %2186 = vmatprep.subr.mxu0 0.0
    %2187 = vmatpush1.msra.mxu0 0.0
    %2188 = vmatprep.subr.mxu0 0.0
    %2189 = vmatpush1.msra.mxu0 0.0
    %2190 = vmatprep.subr.mxu0 0.0
    %2191 = vmatpush1.msra.mxu0 0.0
    %2192 = vmatprep.subr.mxu0 0.0
    %2193 = vmatpush1.msra.mxu0 0.0
    %2194 = vmatprep.subr.mxu0 0.0
    %2195 = vmatpush1.msra.mxu0 0.0
    %2196 = vmatprep.subr.mxu0 0.0
    %2197 = vmatpush1.msra.mxu0 0.0
    %2198 = vmatprep.subr.mxu0 0.0
    %2199 = vmatpush1.msra.mxu0 0.0
    %2200 = vmatprep.subr.mxu0 0.0
    %2201 = vmatpush1.msra.mxu0 0.0
    %2202 = vmatprep.subr.mxu0 0.0
    %2203 = vmatpush1.msra.mxu0 0.0
    %2204 = vmatprep.subr.mxu0 0.0
    %2205 = vmatpush1.msra.mxu0 0.0
    %2206 = vmatprep.subr.mxu0 0.0
    %2207 = vmatpush1.msra.mxu0 0.0
    %2208 = vmatprep.subr.mxu0 0.0
    %2209 = vmatpush1.msra.mxu0 0.0
    %2210 = vmatprep.subr.mxu0 0.0
    %2211 = vmatpush1.msra.mxu0 0.0
    %2212 = vmatprep.subr.mxu0 0.0
    %2213 = vmatpush1.msra.mxu0 0.0
    %2214 = vmatprep.subr.mxu0 0.0
    %2215 = vmatpush1.msra.mxu0 0.0
    %2216 = vmatprep.subr.mxu0 0.0
    %2217 = vmatpush1.msra.mxu0 0.0
    %2218 = vmatprep.subr.mxu0 0.0
    %2219 = vmatpush1.msra.mxu0 0.0
    %2220 = vmatprep.subr.mxu0 0.0
    %2221 = vmatpush1.msra.mxu0 0.0
    %2222 = vmatprep.subr.mxu0 0.0
    %2223 = vmatpush1.msra.mxu0 0.0
    %2224 = vmatprep.subr.mxu0 0.0
    %2225 = vmatpush1.msra.mxu0 0.0
    %2226 = vmatprep.subr.mxu0 0.0
    %2227 = vmatpush1.msra.mxu0 0.0
    %2228 = vmatprep.subr.mxu0 0.0
    %2229 = vmatpush1.msra.mxu0 0.0
    %2230 = vmatprep.subr.mxu0 0.0
    %2231 = vmatpush1.msra.mxu0 0.0
    %2232 = vmatprep.subr.mxu0 0.0
    %2233 = vmatpush1.msra.mxu0 0.0
    %2234 = vmatprep.mubr.f32.mxu0 0.0
    %2235 = vmatmul.mubr.f32.gmra.mrb[0].mxu0 %v2159
    %v2236 = vpop.f32.mrb[0].mxu0
    %v2237 = vadd.f32 0.0, %v2236
    %v2238 = vpop.f32.mrb[0].mxu0
    %2239 = vmatprep.mubr.f32.mxu0 0.0
    %2240 = vmatmul.mubr.f32.gmra.mrb[0].mxu0 %v2162
    %v2241 = vpop.f32.mrb[0].mxu0
    %v2242 = vadd.f32 0.0, %v2241
    %v2243 = vpop.f32.mrb[0].mxu0
    %2244 = vmatprep.mubr.f32.mxu0 0.0
    %2245 = vmatmul.mubr.f32.gmra.mrb[0].mxu0 %v2165
    %v2246 = vpop.f32.mrb[0].mxu0
    %v2247 = vadd.f32 0.0, %v2246
    %v2248 = vpop.f32.mrb[0].mxu0
    %2249 = vmatprep.mubr.f32.mxu0 0.0
    %2250 = vmatmul.mubr.f32.gmra.mrb[0].mxu0 %v2168
    %v2251 = vpop.f32.mrb[0].mxu0
    %v2252 = vadd.f32 0.0, %v2251
    %v2253 = vpop.f32.mrb[0].mxu0
    %2254 = vdwg.mxu0
    %v2255 = vadd.f32 %v1754, %v2237
    %v2256 = vadd.f32 %v1755, %v2242
    %v2257 = vadd.f32 %v1756, %v2247
    %v2258 = vadd.f32 %v1757, %v2252
    %v2259 = vadd.f32 %v160, %v2255
    %v2260 = vadd.f32 %v161, %v2256
    %v2261 = vadd.f32 %v162, %v2257
    %v2262 = vadd.f32 %v163, %v2258
    %v2263 = vlaneseq
    %v2264 = vshrl.u32 %v2263, 7
    %v2265 = vsub.s32 0, %v2264
    %v2266 = vrot.slane %v59, %v2265
    %v2267 = vadd.f32 %v2259, %v2266
    %v2268 = vadd.f32 %v2260, %v2266
    %v2269 = vadd.f32 %v2261, %v2266
    %v2270 = vadd.f32 %v2262, %v2266
    %v2271 = vsel %vm94, %v2267, 0.0
    %2272 = vadd.xlane.f32.xlu0 %v2271
    %v2273 = vpop.xlane.xlu0 %2272
    %v2274 = vsel %vm94, %v2268, 0.0
    %2275 = vadd.xlane.f32.xlu0 %v2274
    %v2276 = vpop.xlane.xlu0 %2275
    %v2277 = vsel %vm94, %v2269, 0.0
    %2278 = vadd.xlane.f32.xlu0 %v2277
    %v2279 = vpop.xlane.xlu0 %2278
    %v2280 = vsel %vm94, %v2270, 0.0
    %2281 = vadd.xlane.f32.xlu0 %v2280
    %v2282 = vpop.xlane.xlu0 %2281
    %v2283 = vmul.f32 %v2273, %v107
    %v2284 = vmul.f32 %v2276, %v107
    %v2285 = vmul.f32 %v2279, %v107
    %v2286 = vmul.f32 %v2282, %v107
    %v2287 = vsub.f32 %v2267, %v2283
    %v2288 = vsub.f32 %v2268, %v2284
    %v2289 = vsub.f32 %v2269, %v2285
    %v2290 = vsub.f32 %v2270, %v2286
    %v2291 = vmul.f32 %v2287, %v2287
    %v2292 = vmul.f32 %v2288, %v2288
    %v2293 = vmul.f32 %v2289, %v2289
    %v2294 = vmul.f32 %v2290, %v2290
    %v2295 = vsel %vm94, %v2291, 0.0
    %2296 = vadd.xlane.f32.xlu0 %v2295
    %v2297 = vpop.xlane.xlu0 %2296
    %v2298 = vsel %vm94, %v2292, 0.0
    %2299 = vadd.xlane.f32.xlu0 %v2298
    %v2300 = vpop.xlane.xlu0 %2299
    %v2301 = vsel %vm94, %v2293, 0.0
    %2302 = vadd.xlane.f32.xlu0 %v2301
    %v2303 = vpop.xlane.xlu0 %2302
    %v2304 = vsel %vm94, %v2294, 0.0
    %2305 = vadd.xlane.f32.xlu0 %v2304
    %v2306 = vpop.xlane.xlu0 %2305
    %v2307 = vmul.f32 %v2297, %v107
    %v2308 = vmul.f32 %v2300, %v107
    %v2309 = vmul.f32 %v2303, %v107
    %v2310 = vmul.f32 %v2306, %v107
    %v2311 = vadd.f32 %v2307, 1e-05
    %v2312 = vadd.f32 %v2308, 1e-05
    %v2313 = vadd.f32 %v2309, 1e-05
    %v2314 = vadd.f32 %v2310, 1e-05
    %v2315 = vrsqrt.pop %v2311
    %v2316 = vrsqrt.pop %v2312
    %v2317 = vrsqrt.pop %v2313
    %v2318 = vrsqrt.pop %v2314
    %v2319 = vmul.f32 %v2287, %v2315
    %v2320 = vmul.f32 %v2288, %v2316
    %v2321 = vmul.f32 %v2289, %v2317
    %v2322 = vmul.f32 %v2290, %v2318
    %v2323 = vlaneseq
    %v2324 = vshrl.u32 %v2323, 7
    %v2325 = vsub.s32 0, %v2324
    %v2326 = vrot.slane %v56, %v2325
    %v2327 = vmul.f32 %v2319, %v2326
    %v2328 = vmul.f32 %v2320, %v2326
    %v2329 = vmul.f32 %v2321, %v2326
    %v2330 = vmul.f32 %v2322, %v2326
    %v2331 = vlaneseq
    %v2332 = vshrl.u32 %v2331, 7
    %v2333 = vsub.s32 0, %v2332
    %v2334 = vrot.slane %v57, %v2333
    %v2335 = vadd.f32 %v2327, %v2334
    %v2336 = vadd.f32 %v2328, %v2334
    %v2337 = vadd.f32 %v2329, %v2334
    %v2338 = vadd.f32 %v2330, %v2334
    %v2339 = vlaneseq
    %v2340 = vshrl.u32 %v2339, 7
    %v2341 = vsub.s32 0, %v2340
    %v2342 = vrot.slane %v60, %v2341
    %v2344 = vsel %vm94, %v2335, 0
    %v2347 = vsel %vm94, %v2336, 0
    %v2350 = vsel %vm94, %v2337, 0
    %v2353 = vsel %vm94, %v2338, 0
    %2355 = vmatprep.subr.mxu0 0.0
    %2356 = vmatpush1.msra.mxu0 %v70
    %2357 = vmatprep.subr.mxu0 0.0
    %2358 = vmatpush1.msra.mxu0 %v71
    %2359 = vmatprep.subr.mxu0 0.0
    %2360 = vmatpush1.msra.mxu0 %v72
    %2361 = vmatprep.subr.mxu0 0.0
    %2362 = vmatpush1.msra.mxu0 %v73
    %2363 = vmatprep.subr.mxu0 0.0
    %2364 = vmatpush1.msra.mxu0 0.0
    %2365 = vmatprep.subr.mxu0 0.0
    %2366 = vmatpush1.msra.mxu0 0.0
    %2367 = vmatprep.subr.mxu0 0.0
    %2368 = vmatpush1.msra.mxu0 0.0
    %2369 = vmatprep.subr.mxu0 0.0
    %2370 = vmatpush1.msra.mxu0 0.0
    %2371 = vmatprep.subr.mxu0 0.0
    %2372 = vmatpush1.msra.mxu0 0.0
    %2373 = vmatprep.subr.mxu0 0.0
    %2374 = vmatpush1.msra.mxu0 0.0
    %2375 = vmatprep.subr.mxu0 0.0
    %2376 = vmatpush1.msra.mxu0 0.0
    %2377 = vmatprep.subr.mxu0 0.0
    %2378 = vmatpush1.msra.mxu0 0.0
    %2379 = vmatprep.subr.mxu0 0.0
    %2380 = vmatpush1.msra.mxu0 0.0
    %2381 = vmatprep.subr.mxu0 0.0
    %2382 = vmatpush1.msra.mxu0 0.0
    %2383 = vmatprep.subr.mxu0 0.0
    %2384 = vmatpush1.msra.mxu0 0.0
    %2385 = vmatprep.subr.mxu0 0.0
    %2386 = vmatpush1.msra.mxu0 0.0
    %2387 = vmatprep.subr.mxu0 0.0
    %2388 = vmatpush1.msra.mxu0 0.0
    %2389 = vmatprep.subr.mxu0 0.0
    %2390 = vmatpush1.msra.mxu0 0.0
    %2391 = vmatprep.subr.mxu0 0.0
    %2392 = vmatpush1.msra.mxu0 0.0
    %2393 = vmatprep.subr.mxu0 0.0
    %2394 = vmatpush1.msra.mxu0 0.0
    %2395 = vmatprep.subr.mxu0 0.0
    %2396 = vmatpush1.msra.mxu0 0.0
    %2397 = vmatprep.subr.mxu0 0.0
    %2398 = vmatpush1.msra.mxu0 0.0
    %2399 = vmatprep.subr.mxu0 0.0
    %2400 = vmatpush1.msra.mxu0 0.0
    %2401 = vmatprep.subr.mxu0 0.0
    %2402 = vmatpush1.msra.mxu0 0.0
    %2403 = vmatprep.subr.mxu0 0.0
    %2404 = vmatpush1.msra.mxu0 0.0
    %2405 = vmatprep.subr.mxu0 0.0
    %2406 = vmatpush1.msra.mxu0 0.0
    %2407 = vmatprep.subr.mxu0 0.0
    %2408 = vmatpush1.msra.mxu0 0.0
    %2409 = vmatprep.subr.mxu0 0.0
    %2410 = vmatpush1.msra.mxu0 0.0
    %2411 = vmatprep.subr.mxu0 0.0
    %2412 = vmatpush1.msra.mxu0 0.0
    %2413 = vmatprep.subr.mxu0 0.0
    %2414 = vmatpush1.msra.mxu0 0.0
    %2415 = vmatprep.subr.mxu0 0.0
    %2416 = vmatpush1.msra.mxu0 0.0
    %2417 = vmatprep.subr.mxu0 0.0
    %2418 = vmatpush1.msra.mxu0 0.0
    %2419 = vmatprep.mubr.f32.mxu0 0.0
    %2420 = vmatmul.mubr.f32.gmra.mrb[0].mxu0 %v2344
    %v2421 = vpop.f32.mrb[0].mxu0
    %v2422 = vadd.f32 %v2342, %v2421
    %v2423 = vpop.f32.mrb[0].mxu0
    %2424 = vmatprep.mubr.f32.mxu0 0.0
    %2425 = vmatmul.mubr.f32.gmra.mrb[0].mxu0 %v2347
    %v2426 = vpop.f32.mrb[0].mxu0
    %v2427 = vadd.f32 %v2342, %v2426
    %v2428 = vpop.f32.mrb[0].mxu0
    %2429 = vmatprep.mubr.f32.mxu0 0.0
    %2430 = vmatmul.mubr.f32.gmra.mrb[0].mxu0 %v2350
    %v2431 = vpop.f32.mrb[0].mxu0
    %v2432 = vadd.f32 %v2342, %v2431
    %v2433 = vpop.f32.mrb[0].mxu0
    %2434 = vmatprep.mubr.f32.mxu0 0.0
    %2435 = vmatmul.mubr.f32.gmra.mrb[0].mxu0 %v2353
    %v2436 = vpop.f32.mrb[0].mxu0
    %v2437 = vadd.f32 %v2342, %v2436
    %v2438 = vpop.f32.mrb[0].mxu0
    %2439 = vdwg.mxu0
    %v2440 = vmul.f32 %v2422, 0.5
    %v2441 = vmul.f32 %v2427, 0.5
    %v2442 = vmul.f32 %v2432, 0.5
    %v2443 = vmul.f32 %v2437, 0.5
    %v2444 = vmul.f32 %v2422, 0.70710677
    %v2445 = vmul.f32 %v2427, 0.70710677
    %v2446 = vmul.f32 %v2432, 0.70710677
    %v2447 = vmul.f32 %v2437, 0.70710677
    %v2448 = vand.u32 2147483647, %v2444
    %v2449 = vand.u32 2147483647, %v2445
    %v2450 = vand.u32 2147483647, %v2446
    %v2451 = vand.u32 2147483647, %v2447
    %v2452 = vmul.f32 %v2448, 0.3275911
    %v2453 = vmul.f32 %v2449, 0.3275911
    %v2454 = vmul.f32 %v2450, 0.3275911
    %v2455 = vmul.f32 %v2451, 0.3275911
    %v2456 = vadd.f32 %v2452, 1.0
    %v2457 = vadd.f32 %v2453, 1.0
    %v2458 = vadd.f32 %v2454, 1.0
    %v2459 = vadd.f32 %v2455, 1.0
    %v2460 = vrcp.pop %v2456
    %v2461 = vmul.f32 1.0, %v2460
    %v2462 = vrcp.pop %v2457
    %v2463 = vmul.f32 1.0, %v2462
    %v2464 = vrcp.pop %v2458
    %v2465 = vmul.f32 1.0, %v2464
    %v2466 = vrcp.pop %v2459
    %v2467 = vmul.f32 1.0, %v2466
    %v2468 = vmul.f32 %v2461, 1.0614054
    %v2469 = vmul.f32 %v2463, 1.0614054
    %v2470 = vmul.f32 %v2465, 1.0614054
    %v2471 = vmul.f32 %v2467, 1.0614054
    %v2472 = vadd.f32 %v2468, -1.4531521
    %v2473 = vadd.f32 %v2469, -1.4531521
    %v2474 = vadd.f32 %v2470, -1.4531521
    %v2475 = vadd.f32 %v2471, -1.4531521
    %v2476 = vmul.f32 %v2472, %v2461
    %v2477 = vmul.f32 %v2473, %v2463
    %v2478 = vmul.f32 %v2474, %v2465
    %v2479 = vmul.f32 %v2475, %v2467
    %v2480 = vadd.f32 %v2476, 1.4214138
    %v2481 = vadd.f32 %v2477, 1.4214138
    %v2482 = vadd.f32 %v2478, 1.4214138
    %v2483 = vadd.f32 %v2479, 1.4214138
    %v2484 = vmul.f32 %v2480, %v2461
    %v2485 = vmul.f32 %v2481, %v2463
    %v2486 = vmul.f32 %v2482, %v2465
    %v2487 = vmul.f32 %v2483, %v2467
    %v2488 = vadd.f32 %v2484, -0.28449672
    %v2489 = vadd.f32 %v2485, -0.28449672
    %v2490 = vadd.f32 %v2486, -0.28449672
    %v2491 = vadd.f32 %v2487, -0.28449672
    %v2492 = vmul.f32 %v2488, %v2461
    %v2493 = vmul.f32 %v2489, %v2463
    %v2494 = vmul.f32 %v2490, %v2465
    %v2495 = vmul.f32 %v2491, %v2467
    %v2496 = vadd.f32 %v2492, 0.2548296
    %v2497 = vadd.f32 %v2493, 0.2548296
    %v2498 = vadd.f32 %v2494, 0.2548296
    %v2499 = vadd.f32 %v2495, 0.2548296
    %v2500 = vmul.f32 %v2496, %v2461
    %v2501 = vmul.f32 %v2497, %v2463
    %v2502 = vmul.f32 %v2498, %v2465
    %v2503 = vmul.f32 %v2499, %v2467
    %v2504 = vsub.f32 0.0, %v2448
    %v2505 = vsub.f32 0.0, %v2449
    %v2506 = vsub.f32 0.0, %v2450
    %v2507 = vsub.f32 0.0, %v2451
    %v2508 = vmul.f32 %v2504, %v2448
    %v2509 = vmul.f32 %v2505, %v2449
    %v2510 = vmul.f32 %v2506, %v2450
    %v2511 = vmul.f32 %v2507, %v2451
    %v2512 = vmul.f32 %v2508, 1.442695
    %v2513 = vpow.pop %v2512
    %v2514 = vmul.f32 %v2509, 1.442695
    %v2515 = vpow.pop %v2514
    %v2516 = vmul.f32 %v2510, 1.442695
    %v2517 = vpow.pop %v2516
    %v2518 = vmul.f32 %v2511, 1.442695
    %v2519 = vpow.pop %v2518
    %v2520 = vmul.f32 %v2500, %v2513
    %v2521 = vmul.f32 %v2501, %v2515
    %v2522 = vmul.f32 %v2502, %v2517
    %v2523 = vmul.f32 %v2503, %v2519
    %v2524 = vsub.f32 1.0, %v2520
    %v2525 = vsub.f32 1.0, %v2521
    %v2526 = vsub.f32 1.0, %v2522
    %v2527 = vsub.f32 1.0, %v2523
    %vm2528 = vcmp.ge.f32.partialorder %v2444, 0.0
    %vm2529 = vcmp.ge.f32.partialorder %v2445, 0.0
    %vm2530 = vcmp.ge.f32.partialorder %v2446, 0.0
    %vm2531 = vcmp.ge.f32.partialorder %v2447, 0.0
    %v2532 = vsub.f32 0.0, %v2524
    %v2533 = vsub.f32 0.0, %v2525
    %v2534 = vsub.f32 0.0, %v2526
    %v2535 = vsub.f32 0.0, %v2527
    %v2536 = vsel %vm2528, %v2524, %v2532
    %v2537 = vsel %vm2529, %v2525, %v2533
    %v2538 = vsel %vm2530, %v2526, %v2534
    %v2539 = vsel %vm2531, %v2527, %v2535
    %v2540 = vadd.f32 %v2536, 1.0
    %v2541 = vadd.f32 %v2537, 1.0
    %v2542 = vadd.f32 %v2538, 1.0
    %v2543 = vadd.f32 %v2539, 1.0
    %v2544 = vmul.f32 %v2440, %v2540
    %v2545 = vmul.f32 %v2441, %v2541
    %v2546 = vmul.f32 %v2442, %v2542
    %v2547 = vmul.f32 %v2443, %v2543
    %2548 = vmatprep.subr.mxu0 0.0
    %2549 = vmatpush1.msra.mxu0 %v74
    %2550 = vmatprep.subr.mxu0 0.0
    %2551 = vmatpush1.msra.mxu0 %v75
    %2552 = vmatprep.subr.mxu0 0.0
    %2553 = vmatpush1.msra.mxu0 %v76
    %2554 = vmatprep.subr.mxu0 0.0
    %2555 = vmatpush1.msra.mxu0 %v77
    %2556 = vmatprep.subr.mxu0 0.0
    %2557 = vmatpush1.msra.mxu0 %v78
    %2558 = vmatprep.subr.mxu0 0.0
    %2559 = vmatpush1.msra.mxu0 %v79
    %2560 = vmatprep.subr.mxu0 0.0
    %2561 = vmatpush1.msra.mxu0 %v80
    %2562 = vmatprep.subr.mxu0 0.0
    %2563 = vmatpush1.msra.mxu0 %v81
    %2564 = vmatprep.subr.mxu0 0.0
    %2565 = vmatpush1.msra.mxu0 %v82
    %2566 = vmatprep.subr.mxu0 0.0
    %2567 = vmatpush1.msra.mxu0 %v83
    %2568 = vmatprep.subr.mxu0 0.0
    %2569 = vmatpush1.msra.mxu0 %v84
    %2570 = vmatprep.subr.mxu0 0.0
    %2571 = vmatpush1.msra.mxu0 %v85
    %2572 = vmatprep.subr.mxu0 0.0
    %2573 = vmatpush1.msra.mxu0 %v86
    %2574 = vmatprep.subr.mxu0 0.0
    %2575 = vmatpush1.msra.mxu0 %v87
    %2576 = vmatprep.subr.mxu0 0.0
    %2577 = vmatpush1.msra.mxu0 %v88
    %2578 = vmatprep.subr.mxu0 0.0
    %2579 = vmatpush1.msra.mxu0 %v89
    %2580 = vmatprep.subr.mxu0 0.0
    %2581 = vmatpush1.msra.mxu0 0.0
    %2582 = vmatprep.subr.mxu0 0.0
    %2583 = vmatpush1.msra.mxu0 0.0
    %2584 = vmatprep.subr.mxu0 0.0
    %2585 = vmatpush1.msra.mxu0 0.0
    %2586 = vmatprep.subr.mxu0 0.0
    %2587 = vmatpush1.msra.mxu0 0.0
    %2588 = vmatprep.subr.mxu0 0.0
    %2589 = vmatpush1.msra.mxu0 0.0
    %2590 = vmatprep.subr.mxu0 0.0
    %2591 = vmatpush1.msra.mxu0 0.0
    %2592 = vmatprep.subr.mxu0 0.0
    %2593 = vmatpush1.msra.mxu0 0.0
    %2594 = vmatprep.subr.mxu0 0.0
    %2595 = vmatpush1.msra.mxu0 0.0
    %2596 = vmatprep.subr.mxu0 0.0
    %2597 = vmatpush1.msra.mxu0 0.0
    %2598 = vmatprep.subr.mxu0 0.0
    %2599 = vmatpush1.msra.mxu0 0.0
    %2600 = vmatprep.subr.mxu0 0.0
    %2601 = vmatpush1.msra.mxu0 0.0
    %2602 = vmatprep.subr.mxu0 0.0
    %2603 = vmatpush1.msra.mxu0 0.0
    %2604 = vmatprep.subr.mxu0 0.0
    %2605 = vmatpush1.msra.mxu0 0.0
    %2606 = vmatprep.subr.mxu0 0.0
    %2607 = vmatpush1.msra.mxu0 0.0
    %2608 = vmatprep.subr.mxu0 0.0
    %2609 = vmatpush1.msra.mxu0 0.0
    %2610 = vmatprep.subr.mxu0 0.0
    %2611 = vmatpush1.msra.mxu0 0.0
    %2612 = vmatprep.mubr.f32.mxu0 0.0
    %2613 = vmatmul.mubr.f32.gmra.mrb[0].mxu0 %v2544
    %v2614 = vpop.f32.mrb[0].mxu0
    %v2615 = vadd.f32 0.0, %v2614
    %v2616 = vpop.f32.mrb[0].mxu0
    %2617 = vmatprep.mubr.f32.mxu0 0.0
    %2618 = vmatmul.mubr.f32.gmra.mrb[0].mxu0 %v2545
    %v2619 = vpop.f32.mrb[0].mxu0
    %v2620 = vadd.f32 0.0, %v2619
    %v2621 = vpop.f32.mrb[0].mxu0
    %2622 = vmatprep.mubr.f32.mxu0 0.0
    %2623 = vmatmul.mubr.f32.gmra.mrb[0].mxu0 %v2546
    %v2624 = vpop.f32.mrb[0].mxu0
    %v2625 = vadd.f32 0.0, %v2624
    %v2626 = vpop.f32.mrb[0].mxu0
    %2627 = vmatprep.mubr.f32.mxu0 0.0
    %2628 = vmatmul.mubr.f32.gmra.mrb[0].mxu0 %v2547
    %v2629 = vpop.f32.mrb[0].mxu0
    %v2630 = vadd.f32 0.0, %v2629
    %v2631 = vpop.f32.mrb[0].mxu0
    %2632 = vdwg.mxu0
    %v2633 = vadd.f32 %v2335, %v2615
    %v2634 = vadd.f32 %v2336, %v2620
    %v2635 = vadd.f32 %v2337, %v2625
    %v2636 = vadd.f32 %v2338, %v2630
    %v2637 = vlaneseq
    %v2638 = vshrl.u32 %v2637, 7
    %v2639 = vsub.s32 0, %v2638
    %v2640 = vrot.slane %v61, %v2639
    %v2641 = vadd.f32 %v2633, %v2640
    %v2642 = vadd.f32 %v2634, %v2640
    %v2643 = vadd.f32 %v2635, %v2640
    %v2644 = vadd.f32 %v2636, %v2640
    %2645 = vst.msk [vmem:[#allocation8] sm:$0xff] %vm94, %v2641
    %2646 = vst.msk [vmem:[#allocation8 + $0x8] sm:$0xff] %vm94, %v2642
    %2647 = vst.msk [vmem:[#allocation8 + $0x10] sm:$0xff] %vm94, %v2643
    %2648 = vst.msk [vmem:[#allocation8 + $0x18] sm:$0xff] %vm94, %v2644
    // Predicated region
    $region26: #{block_forward.1} parent=1 // pred_check
      _
    $region27: #{block_forward.1} parent=1 // pred_check_branch
      %2650 = sbr.rel (0) target = $region29
    $region28: #{block_forward.1} parent=1 // pred_region
      %s2652 = ssub.s32 512, 512
      %2653 = vsyncadd [#allocation4], %s2652
      %s2654 = sshll.u32 [#allocation8], 4
      %s2655 = int_to_ptr.vmem [resolvable:$true] %s2654
      %2660 = dma.vmem_to_hbm [thread:$0]  %s2655, 512, %s3, [#allocation4], 128, 128, 8
    $region29: #{block_forward.1} parent=1 // pred_fallthru
      _
    // Predicated region
    $region30: #{block_forward.1} parent=1 // pred_check
      _
    $region31: #{block_forward.1} parent=1 // pred_check_branch
      %2662 = sbr.rel (0) target = $region33
    $region32: #{block_forward.1} parent=1 // pred_region
      %2663 = dma.done [#allocation4], 512
    $region33: #{block_forward.1} parent=1 // pred_fallthru
      _
    %2664 = vsyncpa [#allocation3], 1
    %2665 = vsyncpa [#allocation6], 1
    %2666 = vsyncpa [#allocation4], 1

</llo_original>
